<compile_context>
chip_gen: v5e
topology: v5e:2x2
jax: 0.10.0
libtpu: 0.0.40
codegen_flags: <defaults>
</compile_context>

<pallas_src>
import jax
import jax.numpy as jnp
from jax.experimental import pallas as pl
from jax.experimental.pallas import tpu as pltpu


def _calculate_split_sizes(total_neurons, num_splits):
    """Port of OperatorNetwork._calculate_split_sizes (pure Python glue)."""
    base_size = total_neurons // num_splits
    remainder = total_neurons % num_splits
    return [base_size + 1 if i < remainder else base_size for i in range(num_splits)]


def deeponet_kernel(bx_ref, txT_ref,
                    bw1_ref, bb1_ref, bw2_ref, bb2_ref,
                    tw1T_ref, tb1T_ref, tw2T_ref, tb2T_ref,
                    b0_ref,
                    out_ref):
    f32 = jnp.float32
    bf16 = jnp.bfloat16

    # --- Branch MLP. Tiny (B*M*H + B*H*P MACs) -> recomputed per N-tile so the
    #     grid axis stays "parallel" (v7x megacore splits N); no cross-step
    #     VMEM cache and therefore no ordering hazard.
    bh = jnp.tanh(
        jnp.dot(bx_ref[...], bw1_ref[...], preferred_element_type=f32)
        + bb1_ref[...])                                            # (B, Hb) f32
    bp = (jnp.dot(bh.astype(bf16), bw2_ref[...], preferred_element_type=f32)
          + bb2_ref[...])                                          # (B, P) f32

    # --- Trunk layer 1 on the VPU in transposed space: K = D is tiny (e.g. 2),
    #     a padded MXU matmul would waste >98% of the contraction depth.
    txT = txT_ref[...]               # (D, TN) f32, lane-dense tile
    tw1T = tw1T_ref[...]             # (Ht, D) f32
    preT = tb1T_ref[...]             # (Ht, 1) f32, broadcasts across TN lanes
    for d in range(txT.shape[0]):    # static unroll over tiny D
        preT = preT + tw1T[:, d:d + 1] * txT[d:d + 1, :]
    thT = jnp.tanh(preT)             # (Ht, TN) f32

    # --- Trunk layer 2 on the MXU, produced directly in (P, TN) orientation.
    tpT = (jnp.dot(tw2T_ref[...], thT.astype(bf16), preferred_element_type=f32)
           + tb2T_ref[...])          # (P, TN) f32

    # --- DeepONet latent contraction: plain NN matmul (B,P)x(P,TN); no
    #     transposed operand and no relayout of a big (TN, P) tile.
    out = jnp.dot(bp.astype(bf16), tpT.astype(bf16), preferred_element_type=f32)
    out_ref[...] = out + b0_ref[0]


def deeponet_forward(branch_input, trunk_input, params, *, tn=512):
    B, M = branch_input.shape
    N, D = trunk_input.shape
    Hb = params["bw1"].shape[1]
    Ht = params["tw1"].shape[1]
    P = params["bw2"].shape[1]

    # Pad B to a sublane multiple and N to a tile multiple so every output
    # store is a full, lane-dense (Bp, tn) tile. Padded rows are sliced off.
    # TODO(synk): for very large batches add a second "parallel" grid axis over
    # B-tiles (tb ~ 128-256) instead of one full-B tile.
    Bp = pl.cdiv(B, 8) * 8
    Np = pl.cdiv(N, tn) * tn
    bx = branch_input if Bp == B else jnp.pad(branch_input, ((0, Bp - B), (0, 0)))
    tx = trunk_input if Np == N else jnp.pad(trunk_input, ((0, Np - N), (0, 0)))

    # One-time layout / dtype prep in the wrapper (tiny, handled by XLA):
    # bf16 MXU operands (f32 accumulation in-kernel), transposed trunk tensors.
    bx_bf = bx.astype(jnp.bfloat16)                       # (Bp, M)
    txT = tx.T                                            # (D, Np) lane-dense
    bw1 = params["bw1"].astype(jnp.bfloat16)              # (M, Hb)
    bw2 = params["bw2"].astype(jnp.bfloat16)              # (Hb, P)
    tw1T = params["tw1"].T                                # (Ht, D) f32 (VPU path)
    tw2T = params["tw2"].T.astype(jnp.bfloat16)           # (P, Ht)
    tb1T = params["tb1"].T                                # (Ht, 1) f32
    tb2T = params["tb2"].T                                # (P, 1) f32
    b0 = params["b0"].reshape((1,)).astype(jnp.float32)   # 1-D SMEM scalar

    grid = (Np // tn,)

    # Weights/biases/branch input: whole array per block, constant block index
    # -> VMEM-resident, not re-DMA'd across grid steps.
    # (At production Hb/Ht/P, add pipeline_mode=pl.Buffered(1) on these to
    #  reclaim the second buffer under v7x's 64 MiB VMEM.)
    def const(shape):
        return pl.BlockSpec(shape, lambda j: (0, 0))

    out = pl.pallas_call(
        deeponet_kernel,
        out_shape=jax.ShapeDtypeStruct((Bp, Np), jnp.float32),
        grid=grid,
        in_specs=[
            const((Bp, M)),                                # branch input (resident)
            pl.BlockSpec((D, tn), lambda j: (0, j)),       # trunk input tile (transposed)
            const((M, Hb)), const((1, Hb)),                # branch layer 1
            const((Hb, P)), const((1, P)),                 # branch layer 2
            const((Ht, D)), const((Ht, 1)),                # trunk layer 1 (transposed)
            const((P, Ht)), const((P, 1)),                 # trunk layer 2 (transposed)
            pl.BlockSpec(memory_space=pltpu.MemorySpace.SMEM),   # b0 scalar
        ],
        out_specs=pl.BlockSpec((Bp, tn), lambda j: (0, j)),
        compiler_params=pltpu.CompilerParams(
            # Single grid axis over N, fully independent steps -> "parallel"
            # (v7x splits it across both TensorCores; neutral on v5e/v6e).
            dimension_semantics=("parallel",),
            # Raise the scoped VMEM budget for large tn; 64 MiB fits the
            # physical ceiling on all of v5e (128 MiB), v6e (128), v7x (64).
            vmem_limit_bytes=64 * 1024 * 1024),
    )(bx_bf, txT,
      bw1, params["bb1"], bw2, params["bb2"],
      tw1T, tb1T, tw2T, tb2T, b0)
    return out[:B, :N]


def deeponet_reference(branch_input, trunk_input, params):
    """Reference with the same numerics as the kernel (bf16 MXU operands,
    f32 accumulation, f32 VPU path for the tiny-K trunk layer 1)."""
    f32, bf16 = jnp.float32, jnp.bfloat16
    bh = jnp.tanh(
        jnp.dot(branch_input.astype(bf16), params["bw1"].astype(bf16),
                preferred_element_type=f32) + params["bb1"])
    bp = jnp.dot(bh.astype(bf16), params["bw2"].astype(bf16),
                 preferred_element_type=f32) + params["bb2"]
    pre = params["tb1"] + (trunk_input[:, :, None] * params["tw1"][None, :, :]).sum(axis=1)
    th = jnp.tanh(pre)
    tp = jnp.dot(th.astype(bf16), params["tw2"].astype(bf16),
                 preferred_element_type=f32) + params["tb2"]
    return (jnp.dot(bp.astype(bf16), tp.astype(bf16).T, preferred_element_type=f32)
            + params["b0"][0, 0])


if __name__ == "__main__":
    # Small but tile-friendly shapes. P = 128 (latent) so the final MXU
    # contraction has full-depth K on v5e and half on v6e/v7x; N = 1024 with
    # tn = 512 exercises a 2-step grid with full lane-dense output tiles.
    B, M = 16, 32      # branch: batch x number of sensor samples
    N, D = 1024, 2     # trunk: query points x coordinate dimension
    H, P = 128, 128    # hidden width, latent (basis) dimension

    # _calculate_split_sizes is for children that split the latent dim across
    # heads; heads should be fused into one P-wide contraction (done here, 1 head).
    assert _calculate_split_sizes(P, 1) == [P]
    # TODO(synk): post_init_check / abstract-method checks are Python-side
    # validation with no kernel equivalent; not translated.

    key = jax.random.PRNGKey(0)
    ks = jax.random.split(key, 12)

    def init(k, shape, scale):
        return (scale * jax.random.normal(k, shape)).astype(jnp.float32)

    params = {
        "bw1": init(ks[0], (M, H), 1.0 / jnp.sqrt(M)),
        "bb1": init(ks[1], (1, H), 0.1),
        "bw2": init(ks[2], (H, P), 1.0 / jnp.sqrt(H)),
        "bb2": init(ks[3], (1, P), 0.1),
        "tw1": init(ks[4], (D, H), 1.0 / jnp.sqrt(D)),
        "tb1": init(ks[5], (1, H), 0.1),
        "tw2": init(ks[6], (H, P), 1.0 / jnp.sqrt(H)),
        "tb2": init(ks[7], (1, P), 0.1),
        "b0":  init(ks[8], (1, 1), 1.0),
    }

    branch_input = jax.random.normal(ks[9], (B, M), dtype=jnp.float32)
    trunk_input = jax.random.normal(ks[10], (N, D), dtype=jnp.float32)

    out = jax.block_until_ready(deeponet_forward(branch_input, trunk_input, params))
    ref = deeponet_reference(branch_input, trunk_input, params)

    assert out.shape == (B, N)
    assert jnp.allclose(out, ref, atol=2e-2, rtol=2e-2)
    print("KERNEL_OK")
</pallas_src>

<mosaic_0001>
module attributes {stable_mosaic.version = 11 : i64} {
  func.func @deeponet_kernel(%arg0: i32, %arg1: memref<16x32xbf16, #tpu.memory_space<vmem>>, %arg2: memref<2x512xf32, #tpu.memory_space<vmem>>, %arg3: memref<32x128xbf16, #tpu.memory_space<vmem>>, %arg4: memref<1x128xf32, #tpu.memory_space<vmem>>, %arg5: memref<128x128xbf16, #tpu.memory_space<vmem>>, %arg6: memref<1x128xf32, #tpu.memory_space<vmem>>, %arg7: memref<128x2xf32, #tpu.memory_space<vmem>>, %arg8: memref<128x1xf32, #tpu.memory_space<vmem>>, %arg9: memref<128x128xbf16, #tpu.memory_space<vmem>>, %arg10: memref<128x1xf32, #tpu.memory_space<vmem>>, %arg11: memref<1xf32, #tpu.memory_space<smem>>, %arg12: memref<16x512xf32, #tpu.memory_space<vmem>>) attributes {dimension_semantics = [#tpu.dimension_semantics<parallel>], iteration_bounds = array<i64: 2>, scalar_prefetch = 0 : i64, scratch_operands = 0 : i64, tpu.core_type = #tpu.core_type<tc>, window_params = [{pipeline_mode = #tpu.pipeline_mode<synchronous>, transform_indices = @transform_0, window_bounds = array<i64: 16, 32>}, {transform_indices = @transform_1, window_bounds = array<i64: 2, 512>}, {pipeline_mode = #tpu.pipeline_mode<synchronous>, transform_indices = @transform_2, window_bounds = array<i64: 32, 128>}, {pipeline_mode = #tpu.pipeline_mode<synchronous>, transform_indices = @transform_3, window_bounds = array<i64: 1, 128>}, {pipeline_mode = #tpu.pipeline_mode<synchronous>, transform_indices = @transform_4, window_bounds = array<i64: 128, 128>}, {pipeline_mode = #tpu.pipeline_mode<synchronous>, transform_indices = @transform_5, window_bounds = array<i64: 1, 128>}, {pipeline_mode = #tpu.pipeline_mode<synchronous>, transform_indices = @transform_6, window_bounds = array<i64: 128, 2>}, {pipeline_mode = #tpu.pipeline_mode<synchronous>, transform_indices = @transform_7, window_bounds = array<i64: 128, 1>}, {pipeline_mode = #tpu.pipeline_mode<synchronous>, transform_indices = @transform_8, window_bounds = array<i64: 128, 128>}, {pipeline_mode = #tpu.pipeline_mode<synchronous>, transform_indices = @transform_9, window_bounds = array<i64: 128, 1>}, {transform_indices = @transform_10, window_bounds = array<i64: 1>}, {transform_indices = @transform_11, window_bounds = array<i64: 16, 512>}]} {
    %c0 = arith.constant 0 : index
    %c0_0 = arith.constant 0 : index
    %0 = vector.load %arg1[%c0, %c0_0] : memref<16x32xbf16, #tpu.memory_space<vmem>>, vector<16x32xbf16>
    %c0_1 = arith.constant 0 : index
    %c0_2 = arith.constant 0 : index
    %1 = vector.load %arg3[%c0_1, %c0_2] : memref<32x128xbf16, #tpu.memory_space<vmem>>, vector<32x128xbf16>
    %cst = arith.constant dense<0.000000e+00> : vector<16x128xf32>
    %2 = tpu.matmul %0, %1, %cst {dimension_numbers = #tpu.dot_dimension_numbers<[1], [0], [0], [1], [0, 0, 1, 1], [], []>} : vector<16x32xbf16>, vector<32x128xbf16>, vector<16x128xf32> -> vector<16x128xf32>
    %c0_3 = arith.constant 0 : index
    %c0_4 = arith.constant 0 : index
    %3 = vector.load %arg4[%c0_3, %c0_4] : memref<1x128xf32, #tpu.memory_space<vmem>>, vector<1x128xf32>
    %4 = vector.broadcast %3 : vector<1x128xf32> to vector<16x128xf32>
    %5 = arith.addf %2, %4 : vector<16x128xf32>
    %6 = math.tanh %5 : vector<16x128xf32>
    %7 = arith.truncf %6 : vector<16x128xf32> to vector<16x128xbf16>
    %c0_5 = arith.constant 0 : index
    %c0_6 = arith.constant 0 : index
    %8 = vector.load %arg5[%c0_5, %c0_6] : memref<128x128xbf16, #tpu.memory_space<vmem>>, vector<128x128xbf16>
    %cst_7 = arith.constant dense<0.000000e+00> : vector<16x128xf32>
    %9 = tpu.matmul %7, %8, %cst_7 {dimension_numbers = #tpu.dot_dimension_numbers<[1], [0], [0], [1], [0, 0, 1, 1], [], []>} : vector<16x128xbf16>, vector<128x128xbf16>, vector<16x128xf32> -> vector<16x128xf32>
    %c0_8 = arith.constant 0 : index
    %c0_9 = arith.constant 0 : index
    %10 = vector.load %arg6[%c0_8, %c0_9] : memref<1x128xf32, #tpu.memory_space<vmem>>, vector<1x128xf32>
    %11 = vector.broadcast %10 : vector<1x128xf32> to vector<16x128xf32>
    %12 = arith.addf %9, %11 : vector<16x128xf32>
    %c0_10 = arith.constant 0 : index
    %c0_11 = arith.constant 0 : index
    %13 = vector.load %arg2[%c0_10, %c0_11] : memref<2x512xf32, #tpu.memory_space<vmem>>, vector<2x512xf32>
    %c0_12 = arith.constant 0 : index
    %c0_13 = arith.constant 0 : index
    %14 = vector.load %arg7[%c0_12, %c0_13] : memref<128x2xf32, #tpu.memory_space<vmem>>, vector<128x2xf32>
    %c0_14 = arith.constant 0 : index
    %c0_15 = arith.constant 0 : index
    %15 = vector.load %arg8[%c0_14, %c0_15] : memref<128x1xf32, #tpu.memory_space<vmem>>, vector<128x1xf32>
    %16 = vector.extract_strided_slice %14 {offsets = [0, 0], sizes = [128, 1], strides = [1, 1]} : vector<128x2xf32> to vector<128x1xf32>
    %17 = vector.extract_strided_slice %13 {offsets = [0, 0], sizes = [1, 512], strides = [1, 1]} : vector<2x512xf32> to vector<1x512xf32>
    %18 = vector.broadcast %16 : vector<128x1xf32> to vector<128x512xf32>
    %19 = vector.broadcast %17 : vector<1x512xf32> to vector<128x512xf32>
    %20 = arith.mulf %18, %19 : vector<128x512xf32>
    %21 = vector.broadcast %15 : vector<128x1xf32> to vector<128x512xf32>
    %22 = arith.addf %21, %20 : vector<128x512xf32>
    %23 = vector.extract_strided_slice %14 {offsets = [0, 1], sizes = [128, 1], strides = [1, 1]} : vector<128x2xf32> to vector<128x1xf32>
    %24 = vector.extract_strided_slice %13 {offsets = [1, 0], sizes = [1, 512], strides = [1, 1]} : vector<2x512xf32> to vector<1x512xf32>
    %25 = vector.broadcast %23 : vector<128x1xf32> to vector<128x512xf32>
    %26 = vector.broadcast %24 : vector<1x512xf32> to vector<128x512xf32>
    %27 = arith.mulf %25, %26 : vector<128x512xf32>
    %28 = arith.addf %22, %27 : vector<128x512xf32>
    %29 = math.tanh %28 : vector<128x512xf32>
    %c0_16 = arith.constant 0 : index
    %c0_17 = arith.constant 0 : index
    %30 = vector.load %arg9[%c0_16, %c0_17] : memref<128x128xbf16, #tpu.memory_space<vmem>>, vector<128x128xbf16>
    %31 = arith.truncf %29 : vector<128x512xf32> to vector<128x512xbf16>
    %cst_18 = arith.constant dense<0.000000e+00> : vector<128x512xf32>
    %32 = tpu.matmul %30, %31, %cst_18 {dimension_numbers = #tpu.dot_dimension_numbers<[1], [0], [0], [1], [0, 0, 1, 1], [], []>} : vector<128x128xbf16>, vector<128x512xbf16>, vector<128x512xf32> -> vector<128x512xf32>
    %c0_19 = arith.constant 0 : index
    %c0_20 = arith.constant 0 : index
    %33 = vector.load %arg10[%c0_19, %c0_20] : memref<128x1xf32, #tpu.memory_space<vmem>>, vector<128x1xf32>
    %34 = vector.broadcast %33 : vector<128x1xf32> to vector<128x512xf32>
    %35 = arith.addf %32, %34 : vector<128x512xf32>
    %36 = arith.truncf %12 : vector<16x128xf32> to vector<16x128xbf16>
    %37 = arith.truncf %35 : vector<128x512xf32> to vector<128x512xbf16>
    %cst_21 = arith.constant dense<0.000000e+00> : vector<16x512xf32>
    %38 = tpu.matmul %36, %37, %cst_21 {dimension_numbers = #tpu.dot_dimension_numbers<[1], [0], [0], [1], [0, 0, 1, 1], [], []>} : vector<16x128xbf16>, vector<128x512xbf16>, vector<16x512xf32> -> vector<16x512xf32>
    %c0_22 = arith.constant 0 : index
    %39 = memref.load %arg11[%c0_22] : memref<1xf32, #tpu.memory_space<smem>>
    %40 = vector.broadcast %39 : f32 to vector<16x512xf32>
    %41 = arith.addf %38, %40 : vector<16x512xf32>
    %c0_23 = arith.constant 0 : index
    %c0_24 = arith.constant 0 : index
    %42 = vector.load %arg12[%c0_23, %c0_24] : memref<16x512xf32, #tpu.memory_space<vmem>>, vector<16x512xf32>
    tpu.vector_store %arg12[%c0_23, %c0_24], %41 {strides = array<i32>} : memref<16x512xf32, #tpu.memory_space<vmem>>, vector<16x512xf32>,
    return
  }
  func.func @transform_0(%arg0: i32) -> (i32, i32) {
    %c0_i32 = arith.constant 0 : i32
    %c0_i32_0 = arith.constant 0 : i32
    %c0_i32_1 = arith.constant 0 : i32
    return %c0_i32, %c0_i32_0 : i32, i32
  }
  func.func @transform_1(%arg0: i32) -> (i32, i32) {
    %c0_i32 = arith.constant 0 : i32
    %c0_i32_0 = arith.constant 0 : i32
    return %c0_i32, %arg0 : i32, i32
  }
  func.func @transform_2(%arg0: i32) -> (i32, i32) {
    %c0_i32 = arith.constant 0 : i32
    %c0_i32_0 = arith.constant 0 : i32
    %c0_i32_1 = arith.constant 0 : i32
    return %c0_i32, %c0_i32_0 : i32, i32
  }
  func.func @transform_3(%arg0: i32) -> (i32, i32) {
    %c0_i32 = arith.constant 0 : i32
    %c0_i32_0 = arith.constant 0 : i32
    %c0_i32_1 = arith.constant 0 : i32
    return %c0_i32, %c0_i32_0 : i32, i32
  }
  func.func @transform_4(%arg0: i32) -> (i32, i32) {
    %c0_i32 = arith.constant 0 : i32
    %c0_i32_0 = arith.constant 0 : i32
    %c0_i32_1 = arith.constant 0 : i32
    return %c0_i32, %c0_i32_0 : i32, i32
  }
  func.func @transform_5(%arg0: i32) -> (i32, i32) {
    %c0_i32 = arith.constant 0 : i32
    %c0_i32_0 = arith.constant 0 : i32
    %c0_i32_1 = arith.constant 0 : i32
    return %c0_i32, %c0_i32_0 : i32, i32
  }
  func.func @transform_6(%arg0: i32) -> (i32, i32) {
    %c0_i32 = arith.constant 0 : i32
    %c0_i32_0 = arith.constant 0 : i32
    %c0_i32_1 = arith.constant 0 : i32
    return %c0_i32, %c0_i32_0 : i32, i32
  }
  func.func @transform_7(%arg0: i32) -> (i32, i32) {
    %c0_i32 = arith.constant 0 : i32
    %c0_i32_0 = arith.constant 0 : i32
    %c0_i32_1 = arith.constant 0 : i32
    return %c0_i32, %c0_i32_0 : i32, i32
  }
  func.func @transform_8(%arg0: i32) -> (i32, i32) {
    %c0_i32 = arith.constant 0 : i32
    %c0_i32_0 = arith.constant 0 : i32
    %c0_i32_1 = arith.constant 0 : i32
    return %c0_i32, %c0_i32_0 : i32, i32
  }
  func.func @transform_9(%arg0: i32) -> (i32, i32) {
    %c0_i32 = arith.constant 0 : i32
    %c0_i32_0 = arith.constant 0 : i32
    %c0_i32_1 = arith.constant 0 : i32
    return %c0_i32, %c0_i32_0 : i32, i32
  }
  func.func @transform_10(%arg0: i32) -> i32 {
    %c0_i32 = arith.constant 0 : i32
    %c0_i32_0 = arith.constant 0 : i32
    return %c0_i32 : i32
  }
  func.func @transform_11(%arg0: i32) -> (i32, i32) {
    %c0_i32 = arith.constant 0 : i32
    %c0_i32_0 = arith.constant 0 : i32
    return %c0_i32, %arg0 : i32, i32
  }
}

</mosaic_0001>

<llo_original>
// kernel: tpu_custom_call.1
$region0: #{tpu_custom_call.1}
  #allocation0 [shape = 'u32[]', space=smem, size = 0x4, offset = 0x4, fixed_abs, tag = 'smem constant byte address 0x4 - core index']
  #allocation1 [shape = 'u32[72,128]{1,0:T(1,128)}', space=vmem, size = 0x9000, scoped, tag = 'internal scratch']
  #allocation2 [shape = 'f32[1]{0:T(128)S(6)}', space=smem, size = 0x200, scoped, tag = 'scoped memory for tpu_custom_call.1']
  %s0 = inlined_call_operand.vmem [shape: bf16[16,32], index: 0, kind: input, shape index: {}]
  %s1 = inlined_call_operand.vmem [shape: f32[2,1024], index: 1, kind: input, shape index: {}]
  %s2 = inlined_call_operand.vmem [shape: bf16[32,128], index: 2, kind: input, shape index: {}]
  %s3 = inlined_call_operand.vmem [shape: f32[1,128], index: 3, kind: input, shape index: {}]
  %s4 = inlined_call_operand.vmem [shape: bf16[128,128], index: 4, kind: input, shape index: {}]
  %s5 = inlined_call_operand.vmem [shape: f32[1,128], index: 5, kind: input, shape index: {}]
  %s6 = inlined_call_operand.vmem [shape: f32[128,2], index: 6, kind: input, shape index: {}]
  %s7 = inlined_call_operand.vmem [shape: f32[128,1], index: 7, kind: input, shape index: {}]
  %s8 = inlined_call_operand.vmem [shape: bf16[128,128], index: 8, kind: input, shape index: {}]
  %s9 = inlined_call_operand.vmem [shape: f32[128,1], index: 9, kind: input, shape index: {}]
  %s10 = inlined_call_operand.<no memory space> [shape: f32[1], index: 10, kind: input, shape index: {}]
  %s11 = inlined_call_operand.hbm [shape: f32[16,1024], index: 11, kind: output, shape index: {}]
  %s12 = sld [smem:[#allocation0]]
  $region77: #{tpu_custom_call.1} parent=0
    _
  %s14 = ssub.s32 1, %s12
  %s15 = scalar_select 0, %s14, %s12
  %16 = sst [smem:[#allocation2]] %s10
  $region1: #{tpu_custom_call.1} parent=0
    #allocation3 [shape = 'u8[65536]{0}', space=vmem, size = 0x10000, scoped, tag = 'output window, operand 0']
    #allocation4 [shape = 's32[2]{0}', space=sflag, size = 0x8, scoped, tag = 'scoped memory for tpu_custom_call.1']
    %17 = vsyncpa [#allocation4], 0
    %s18 = scalar_lea.sflag [#allocation4], 1
    %19 = vsyncpa %s18, 0
    loop: start=0, step=1, limit=4
    $region2: #{tpu_custom_call.1} parent=1 // loop_pre_header
      _
    $region3: #{tpu_custom_call.1} parent=1 // loop_header
      %s21 = sphi 0, %s25
      %p22 = scmp.ge.s32.totalorder %s21, 4
      %s29 = sphi 0, %s29
      %s31 = sphi 0, %s29
      %s32 = sphi 0, %s31
      %s46 = sphi 0, %s32
      %s52 = sphi 0, %s54
      %s55 = sphi 0, %s52
      %s56 = sphi 0, %s55
      %s72 = sphi 0, %s56
      %s76 = sphi 0, %s76
      %s78 = sphi 0, %s76
      %s79 = sphi 0, %s78
      %s93 = sphi 0, %s79
      %s97 = sphi 0, %s97
      %s99 = sphi 0, %s97
      %s100 = sphi 0, %s99
      %s114 = sphi 0, %s100
      %s118 = sphi 0, %s118
      %s120 = sphi 0, %s118
      %s121 = sphi 0, %s120
      %s135 = sphi 0, %s121
      %s139 = sphi 0, %s139
      %s141 = sphi 0, %s139
      %s142 = sphi 0, %s141
      %s156 = sphi 0, %s142
      %s160 = sphi 0, %s160
      %s162 = sphi 0, %s160
      %s163 = sphi 0, %s162
      %s177 = sphi 0, %s163
      %s181 = sphi 0, %s181
      %s183 = sphi 0, %s181
      %s184 = sphi 0, %s183
      %s198 = sphi 0, %s184
      %s202 = sphi 0, %s202
      %s204 = sphi 0, %s202
      %s205 = sphi 0, %s204
      %s219 = sphi 0, %s205
      %s223 = sphi 0, %s223
      %s225 = sphi 0, %s223
      %s226 = sphi 0, %s225
      %s240 = sphi 0, %s226
      %s244 = sphi 0, %s244
      %s246 = sphi 0, %s244
      %s247 = sphi 0, %s246
      %s261 = sphi 0, %s247
      %s267 = sphi 0, %s269
      %s270 = sphi 0, %s267
      %s271 = sphi 0, %s270
      %s287 = sphi 0, %s271
    $region4: #{tpu_custom_call.1} parent=1 // loop_header_branch
      %24 = sbr.rel (%p22) target = $region8
    $region5: #{tpu_custom_call.1} parent=1 // loop_body
      %s26 = ssub.s32 %s21, 1
      %s27 = ssub.s32 %s21, 2
      %s28 = sadd.s32 %s21, 1
      %s30 = sadd.s32 %s29, 1
      %p33 = scmp.eq.s32.totalorder %s21, 1
      %p34 = scmp.ne.s32.totalorder %s29, %s31
      %p35 = scmp.eq.s32.totalorder %s21, 0
      %p36 = por %p34, %p35
      %p37 = scmp.ne.s32.totalorder %s29, %s31
      %p38 = scmp.eq.s32.totalorder %s26, 1
      %p39 = por %p37, %p38
      %p40 = scmp.ne.s32.totalorder %s31, %s32
      %p41 = scmp.eq.s32.totalorder %s26, 0
      %p42 = por %p40, %p41
      %p43 = scmp.ne.s32.totalorder %s31, %s32
      %p44 = scmp.eq.s32.totalorder %s27, 1
      %p45 = por %p43, %p44
      %p47 = scmp.ne.s32.totalorder %s32, %s46
      %p48 = scmp.eq.s32.totalorder %s27, 0
      %p49 = por %p47, %p48
      %s50 = ssub.s32 %s21, %s28
      %p51 = scmp.eq.s32.totalorder %s50, 0
      %s53 = sadd.s32 %s52, 1
      %s54 = scalar_select %p51, %s52, %s53
      %p57 = pneg %p51
      %p58 = scmp.eq.s32.totalorder %s21, 1
      %p59 = por %p57, %p58
      %p60 = scmp.ne.s32.totalorder %s52, %s55
      %p61 = scmp.eq.s32.totalorder %s21, 0
      %p62 = por %p60, %p61
      %p63 = scmp.ne.s32.totalorder %s52, %s55
      %p64 = scmp.eq.s32.totalorder %s26, 1
      %p65 = por %p63, %p64
      %p66 = scmp.ne.s32.totalorder %s55, %s56
      %p67 = scmp.eq.s32.totalorder %s26, 0
      %p68 = por %p66, %p67
      %p69 = scmp.ne.s32.totalorder %s55, %s56
      %p70 = scmp.eq.s32.totalorder %s27, 1
      %p71 = por %p69, %p70
      %p73 = scmp.ne.s32.totalorder %s56, %s72
      %p74 = scmp.eq.s32.totalorder %s27, 0
      %p75 = por %p73, %p74
      %s77 = sadd.s32 %s76, 1
      %p80 = scmp.eq.s32.totalorder %s21, 1
      %p81 = scmp.ne.s32.totalorder %s76, %s78
      %p82 = scmp.eq.s32.totalorder %s21, 0
      %p83 = por %p81, %p82
      %p84 = scmp.ne.s32.totalorder %s76, %s78
      %p85 = scmp.eq.s32.totalorder %s26, 1
      %p86 = por %p84, %p85
      %p87 = scmp.ne.s32.totalorder %s78, %s79
      %p88 = scmp.eq.s32.totalorder %s26, 0
      %p89 = por %p87, %p88
      %p90 = scmp.ne.s32.totalorder %s78, %s79
      %p91 = scmp.eq.s32.totalorder %s27, 1
      %p92 = por %p90, %p91
      %p94 = scmp.ne.s32.totalorder %s79, %s93
      %p95 = scmp.eq.s32.totalorder %s27, 0
      %p96 = por %p94, %p95
      %s98 = sadd.s32 %s97, 1
      %p101 = scmp.eq.s32.totalorder %s21, 1
      %p102 = scmp.ne.s32.totalorder %s97, %s99
      %p103 = scmp.eq.s32.totalorder %s21, 0
      %p104 = por %p102, %p103
      %p105 = scmp.ne.s32.totalorder %s97, %s99
      %p106 = scmp.eq.s32.totalorder %s26, 1
      %p107 = por %p105, %p106
      %p108 = scmp.ne.s32.totalorder %s99, %s100
      %p109 = scmp.eq.s32.totalorder %s26, 0
      %p110 = por %p108, %p109
      %p111 = scmp.ne.s32.totalorder %s99, %s100
      %p112 = scmp.eq.s32.totalorder %s27, 1
      %p113 = por %p111, %p112
      %p115 = scmp.ne.s32.totalorder %s100, %s114
      %p116 = scmp.eq.s32.totalorder %s27, 0
      %p117 = por %p115, %p116
      %s119 = sadd.s32 %s118, 1
      %p122 = scmp.eq.s32.totalorder %s21, 1
      %p123 = scmp.ne.s32.totalorder %s118, %s120
      %p124 = scmp.eq.s32.totalorder %s21, 0
      %p125 = por %p123, %p124
      %p126 = scmp.ne.s32.totalorder %s118, %s120
      %p127 = scmp.eq.s32.totalorder %s26, 1
      %p128 = por %p126, %p127
      %p129 = scmp.ne.s32.totalorder %s120, %s121
      %p130 = scmp.eq.s32.totalorder %s26, 0
      %p131 = por %p129, %p130
      %p132 = scmp.ne.s32.totalorder %s120, %s121
      %p133 = scmp.eq.s32.totalorder %s27, 1
      %p134 = por %p132, %p133
      %p136 = scmp.ne.s32.totalorder %s121, %s135
      %p137 = scmp.eq.s32.totalorder %s27, 0
      %p138 = por %p136, %p137
      %s140 = sadd.s32 %s139, 1
      %p143 = scmp.eq.s32.totalorder %s21, 1
      %p144 = scmp.ne.s32.totalorder %s139, %s141
      %p145 = scmp.eq.s32.totalorder %s21, 0
      %p146 = por %p144, %p145
      %p147 = scmp.ne.s32.totalorder %s139, %s141
      %p148 = scmp.eq.s32.totalorder %s26, 1
      %p149 = por %p147, %p148
      %p150 = scmp.ne.s32.totalorder %s141, %s142
      %p151 = scmp.eq.s32.totalorder %s26, 0
      %p152 = por %p150, %p151
      %p153 = scmp.ne.s32.totalorder %s141, %s142
      %p154 = scmp.eq.s32.totalorder %s27, 1
      %p155 = por %p153, %p154
      %p157 = scmp.ne.s32.totalorder %s142, %s156
      %p158 = scmp.eq.s32.totalorder %s27, 0
      %p159 = por %p157, %p158
      %s161 = sadd.s32 %s160, 1
      %p164 = scmp.eq.s32.totalorder %s21, 1
      %p165 = scmp.ne.s32.totalorder %s160, %s162
      %p166 = scmp.eq.s32.totalorder %s21, 0
      %p167 = por %p165, %p166
      %p168 = scmp.ne.s32.totalorder %s160, %s162
      %p169 = scmp.eq.s32.totalorder %s26, 1
      %p170 = por %p168, %p169
      %p171 = scmp.ne.s32.totalorder %s162, %s163
      %p172 = scmp.eq.s32.totalorder %s26, 0
      %p173 = por %p171, %p172
      %p174 = scmp.ne.s32.totalorder %s162, %s163
      %p175 = scmp.eq.s32.totalorder %s27, 1
      %p176 = por %p174, %p175
      %p178 = scmp.ne.s32.totalorder %s163, %s177
      %p179 = scmp.eq.s32.totalorder %s27, 0
      %p180 = por %p178, %p179
      %s182 = sadd.s32 %s181, 1
      %p185 = scmp.eq.s32.totalorder %s21, 1
      %p186 = scmp.ne.s32.totalorder %s181, %s183
      %p187 = scmp.eq.s32.totalorder %s21, 0
      %p188 = por %p186, %p187
      %p189 = scmp.ne.s32.totalorder %s181, %s183
      %p190 = scmp.eq.s32.totalorder %s26, 1
      %p191 = por %p189, %p190
      %p192 = scmp.ne.s32.totalorder %s183, %s184
      %p193 = scmp.eq.s32.totalorder %s26, 0
      %p194 = por %p192, %p193
      %p195 = scmp.ne.s32.totalorder %s183, %s184
      %p196 = scmp.eq.s32.totalorder %s27, 1
      %p197 = por %p195, %p196
      %p199 = scmp.ne.s32.totalorder %s184, %s198
      %p200 = scmp.eq.s32.totalorder %s27, 0
      %p201 = por %p199, %p200
      %s203 = sadd.s32 %s202, 1
      %p206 = scmp.eq.s32.totalorder %s21, 1
      %p207 = scmp.ne.s32.totalorder %s202, %s204
      %p208 = scmp.eq.s32.totalorder %s21, 0
      %p209 = por %p207, %p208
      %p210 = scmp.ne.s32.totalorder %s202, %s204
      %p211 = scmp.eq.s32.totalorder %s26, 1
      %p212 = por %p210, %p211
      %p213 = scmp.ne.s32.totalorder %s204, %s205
      %p214 = scmp.eq.s32.totalorder %s26, 0
      %p215 = por %p213, %p214
      %p216 = scmp.ne.s32.totalorder %s204, %s205
      %p217 = scmp.eq.s32.totalorder %s27, 1
      %p218 = por %p216, %p217
      %p220 = scmp.ne.s32.totalorder %s205, %s219
      %p221 = scmp.eq.s32.totalorder %s27, 0
      %p222 = por %p220, %p221
      %s224 = sadd.s32 %s223, 1
      %p227 = scmp.eq.s32.totalorder %s21, 1
      %p228 = scmp.ne.s32.totalorder %s223, %s225
      %p229 = scmp.eq.s32.totalorder %s21, 0
      %p230 = por %p228, %p229
      %p231 = scmp.ne.s32.totalorder %s223, %s225
      %p232 = scmp.eq.s32.totalorder %s26, 1
      %p233 = por %p231, %p232
      %p234 = scmp.ne.s32.totalorder %s225, %s226
      %p235 = scmp.eq.s32.totalorder %s26, 0
      %p236 = por %p234, %p235
      %p237 = scmp.ne.s32.totalorder %s225, %s226
      %p238 = scmp.eq.s32.totalorder %s27, 1
      %p239 = por %p237, %p238
      %p241 = scmp.ne.s32.totalorder %s226, %s240
      %p242 = scmp.eq.s32.totalorder %s27, 0
      %p243 = por %p241, %p242
      %s245 = sadd.s32 %s244, 1
      %p248 = scmp.eq.s32.totalorder %s21, 1
      %p249 = scmp.ne.s32.totalorder %s244, %s246
      %p250 = scmp.eq.s32.totalorder %s21, 0
      %p251 = por %p249, %p250
      %p252 = scmp.ne.s32.totalorder %s244, %s246
      %p253 = scmp.eq.s32.totalorder %s26, 1
      %p254 = por %p252, %p253
      %p255 = scmp.ne.s32.totalorder %s246, %s247
      %p256 = scmp.eq.s32.totalorder %s26, 0
      %p257 = por %p255, %p256
      %p258 = scmp.ne.s32.totalorder %s246, %s247
      %p259 = scmp.eq.s32.totalorder %s27, 1
      %p260 = por %p258, %p259
      %p262 = scmp.ne.s32.totalorder %s247, %s261
      %p263 = scmp.eq.s32.totalorder %s27, 0
      %p264 = por %p262, %p263
      %s265 = ssub.s32 %s21, %s28
      %p266 = scmp.eq.s32.totalorder %s265, 0
      %s268 = sadd.s32 %s267, 1
      %s269 = scalar_select %p266, %s267, %s268
      %p272 = pneg %p266
      %p273 = scmp.eq.s32.totalorder %s21, 1
      %p274 = por %p272, %p273
      %p275 = scmp.ne.s32.totalorder %s267, %s270
      %p276 = scmp.eq.s32.totalorder %s21, 0
      %p277 = por %p275, %p276
      %p278 = scmp.ne.s32.totalorder %s267, %s270
      %p279 = scmp.eq.s32.totalorder %s26, 1
      %p280 = por %p278, %p279
      %p281 = scmp.ne.s32.totalorder %s270, %s271
      %p282 = scmp.eq.s32.totalorder %s26, 0
      %p283 = por %p281, %p282
      %p284 = scmp.ne.s32.totalorder %s270, %s271
      %p285 = scmp.eq.s32.totalorder %s27, 1
      %p286 = por %p284, %p285
      %p288 = scmp.ne.s32.totalorder %s271, %s287
      %p289 = scmp.eq.s32.totalorder %s27, 0
      %p290 = por %p288, %p289
      %p291 = scmp.le.s32.totalorder 1, %s21
      %p292 = scmp.lt.s32.totalorder %s21, 3
      %p293 = pnand %p291, %p292
      %p294 = pneg %p293
      // Predicated region
      $region9: #{tpu_custom_call.1} parent=5 // pred_check
        _
      $region10: #{tpu_custom_call.1} parent=5 // pred_check_branch
        %296 = sbr.rel (%p293) target = $region12
      $region11: #{tpu_custom_call.1} parent=5 // pred_region
        %s297 = ssub.s32 %s21, 1
        // Predicated region
        $region13: #{tpu_custom_call.1} parent=11 // pred_check
          %p298 = pneg %p42
        $region14: #{tpu_custom_call.1} parent=11 // pred_check_branch
          %300 = sbr.rel (%p298) target = $region16
        $region15: #{tpu_custom_call.1} parent=11 // pred_region
          _
        $region16: #{tpu_custom_call.1} parent=11 // pred_fallthru
          _
        // Predicated region
        $region17: #{tpu_custom_call.1} parent=11 // pred_check
          %p301 = pneg %p89
        $region18: #{tpu_custom_call.1} parent=11 // pred_check_branch
          %303 = sbr.rel (%p301) target = $region20
        $region19: #{tpu_custom_call.1} parent=11 // pred_region
          _
        $region20: #{tpu_custom_call.1} parent=11 // pred_fallthru
          _
        // Predicated region
        $region21: #{tpu_custom_call.1} parent=11 // pred_check
          %p304 = pneg %p110
        $region22: #{tpu_custom_call.1} parent=11 // pred_check_branch
          %306 = sbr.rel (%p304) target = $region24
        $region23: #{tpu_custom_call.1} parent=11 // pred_region
          _
        $region24: #{tpu_custom_call.1} parent=11 // pred_fallthru
          _
        // Predicated region
        $region25: #{tpu_custom_call.1} parent=11 // pred_check
          %p307 = pneg %p131
        $region26: #{tpu_custom_call.1} parent=11 // pred_check_branch
          %309 = sbr.rel (%p307) target = $region28
        $region27: #{tpu_custom_call.1} parent=11 // pred_region
          _
        $region28: #{tpu_custom_call.1} parent=11 // pred_fallthru
          _
        // Predicated region
        $region29: #{tpu_custom_call.1} parent=11 // pred_check
          %p310 = pneg %p152
        $region30: #{tpu_custom_call.1} parent=11 // pred_check_branch
          %312 = sbr.rel (%p310) target = $region32
        $region31: #{tpu_custom_call.1} parent=11 // pred_region
          _
        $region32: #{tpu_custom_call.1} parent=11 // pred_fallthru
          _
        // Predicated region
        $region33: #{tpu_custom_call.1} parent=11 // pred_check
          %p313 = pneg %p173
        $region34: #{tpu_custom_call.1} parent=11 // pred_check_branch
          %315 = sbr.rel (%p313) target = $region36
        $region35: #{tpu_custom_call.1} parent=11 // pred_region
          _
        $region36: #{tpu_custom_call.1} parent=11 // pred_fallthru
          _
        // Predicated region
        $region37: #{tpu_custom_call.1} parent=11 // pred_check
          %p316 = pneg %p194
        $region38: #{tpu_custom_call.1} parent=11 // pred_check_branch
          %318 = sbr.rel (%p316) target = $region40
        $region39: #{tpu_custom_call.1} parent=11 // pred_region
          _
        $region40: #{tpu_custom_call.1} parent=11 // pred_fallthru
          _
        // Predicated region
        $region41: #{tpu_custom_call.1} parent=11 // pred_check
          %p319 = pneg %p215
        $region42: #{tpu_custom_call.1} parent=11 // pred_check_branch
          %321 = sbr.rel (%p319) target = $region44
        $region43: #{tpu_custom_call.1} parent=11 // pred_region
          _
        $region44: #{tpu_custom_call.1} parent=11 // pred_fallthru
          _
        // Predicated region
        $region45: #{tpu_custom_call.1} parent=11 // pred_check
          %p322 = pneg %p236
        $region46: #{tpu_custom_call.1} parent=11 // pred_check_branch
          %324 = sbr.rel (%p322) target = $region48
        $region47: #{tpu_custom_call.1} parent=11 // pred_region
          _
        $region48: #{tpu_custom_call.1} parent=11 // pred_fallthru
          _
        // Predicated region
        $region49: #{tpu_custom_call.1} parent=11 // pred_check
          %p325 = pneg %p257
        $region50: #{tpu_custom_call.1} parent=11 // pred_check_branch
          %327 = sbr.rel (%p325) target = $region52
        $region51: #{tpu_custom_call.1} parent=11 // pred_region
          _
        $region52: #{tpu_custom_call.1} parent=11 // pred_fallthru
          _
      $region12: #{tpu_custom_call.1} parent=5 // pred_fallthru
        _
      %p328 = scmp.lt.s32.totalorder %s21, 2
      // Predicated region
      $region53: #{tpu_custom_call.1} parent=5 // pred_check
        %p329 = pneg %p328
      $region54: #{tpu_custom_call.1} parent=5 // pred_check_branch
        %331 = sbr.rel (%p329) target = $region56
      $region55: #{tpu_custom_call.1} parent=5 // pred_region
        // Predicated region
        $region57: #{tpu_custom_call.1} parent=55 // pred_check
          %p332 = pneg %p62
        $region58: #{tpu_custom_call.1} parent=55 // pred_check_branch
          %334 = sbr.rel (%p332) target = $region60
        $region59: #{tpu_custom_call.1} parent=55 // pred_region
          %s335 = smul.u32 4, %s21
          %p336 = scmp.lt.s32.totalorder %s335, 7
          %s337 = scalar_select %p336, %s335, 7
          %s338 = smul.addr %s337, 2
          %s339 = scalar_lea.vmem %s1, %s338
          %s340 = smul.u32 4, %s21
        $region60: #{tpu_custom_call.1} parent=55 // pred_fallthru
          _
      $region56: #{tpu_custom_call.1} parent=5 // pred_fallthru
        _
      %p341 = scmp.le.s32.totalorder 1, %s21
      %p342 = scmp.lt.s32.totalorder %s21, 3
      %p343 = pnand %p341, %p342
      %p344 = pneg %p343
      // Predicated region
      $region61: #{tpu_custom_call.1} parent=5 // pred_check
        _
      $region62: #{tpu_custom_call.1} parent=5 // pred_check_branch
        %346 = sbr.rel (%p343) target = $region64
      $region63: #{tpu_custom_call.1} parent=5 // pred_region
        %s347 = ssub.s32 %s21, 1
        %p348 = pneg %p42
        %p349 = pneg %p39
        %s350 = smul.u32 4, %s26
        %p351 = scmp.lt.s32.totalorder %s350, 7
        %s352 = scalar_select %p351, %s350, 7
        %s353 = smul.addr %s352, 2
        %s354 = scalar_lea.vmem %s1, %s353
        %p355 = pneg %p68
        %p356 = pneg %p65
        %p357 = pneg %p89
        %p358 = pneg %p86
        %p359 = pneg %p110
        %p360 = pneg %p107
        %p361 = pneg %p131
        %p362 = pneg %p128
        %p363 = pneg %p152
        %p364 = pneg %p149
        %p365 = pneg %p173
        %p366 = pneg %p170
        %p367 = pneg %p194
        %p368 = pneg %p191
        %p369 = pneg %p215
        %p370 = pneg %p212
        %p371 = pneg %p236
        %p372 = pneg %p233
        %p373 = pneg %p257
        %p374 = pneg %p254
        %p375 = pneg %p283
        %p376 = pneg %p280
        %s377 = sand.u32 %s270, 1
        %s378 = scalar_lea.sflag [#allocation4], %s377
        %s379 = sand.u32 %s270, 1
        %s380 = smul.addr %s379, 64
        %s381 = scalar_lea.vmem [#allocation3], %s380
        %s382 = smul.u32 4, %s26
        %p383 = scmp.lt.s32.totalorder %s382, 7
        %s384 = scalar_select %p383, %s382, 7
        %s385 = smul.addr %s384, 2
        %s386 = scalar_lea.vmem %s1, %s385
        %s387 = smul.u32 4, %s26
        %s388 = smul.u32 4, %s26
        %v390 = vld [vmem:[%s0] sm:$0xf]
        %v391 = vld [vmem:[%s0 + $0x4] sm:$0xf]
        %v392 = vld [vmem:[%s2] sm:$0xf]
        %v393 = vld [vmem:[%s2 + $0x4] sm:$0xf]
        %v394 = vld [vmem:[%s2 + $0x8] sm:$0xf]
        %v395 = vld [vmem:[%s2 + $0xc] sm:$0xf]
        %v396 = vld [vmem:[%s3] sm:$0x1]
        %v398 = vperm.slane %v396, 0
        %v402 = vunpack.c.l.b16 %v390
        %v403 = vunpack.c.l.b16 %v391
        %v404 = vpack.c.b16 %v403, %v402
        %v409 = vunpack.c.l.b16 %v392
        %v410 = vunpack.c.l.b16 %v393
        %v411 = vunpack.c.l.b16 %v394
        %v412 = vunpack.c.l.b16 %v395
        %v413 = vpack.c.b16 %v410, %v409
        %v414 = vpack.c.b16 %v412, %v411
        %vm417 = vcmask 261120
        %v419 = vsel %vm417, %v404, 0
        %421 = vmatpush.bf16.msra.mxu0 0
        %422 = vmatpush.bf16.msra.mxu0 0
        %423 = vmatpush.bf16.msra.mxu0 0
        %424 = vmatpush.bf16.msra.mxu0 0
        %425 = vmatpush.bf16.msra.mxu0 0
        %426 = vmatpush.bf16.msra.mxu0 0
        %427 = vmatpush.bf16.msra.mxu0 %v414
        %428 = vmatpush.bf16.msra.mxu0 %v413
        %429 = vmatmul.bf16.gmra.mxu0 %v419
        %v430 = vpop.f32.mrf.mxu0
        %v431 = vadd.f32 %v398, %v430
        %v432 = vpop.f32.mrf.mxu0
        %v433 = vadd.f32 %v398, %v432
        %434 = vdwg.mxu0
        %v435 = vtanh.pop %v431
        %v436 = vtanh.pop %v433
        %v437 = vpack.c.bf16 %v436, %v435
        %v438 = vld [vmem:[%s4] sm:$0xf]
        %v439 = vld [vmem:[%s4 + $0x4] sm:$0xf]
        %v440 = vld [vmem:[%s4 + $0x8] sm:$0xf]
        %v441 = vld [vmem:[%s4 + $0xc] sm:$0xf]
        %v442 = vld [vmem:[%s4 + $0x10] sm:$0xf]
        %v443 = vld [vmem:[%s4 + $0x14] sm:$0xf]
        %v444 = vld [vmem:[%s4 + $0x18] sm:$0xf]
        %v445 = vld [vmem:[%s4 + $0x1c] sm:$0xf]
        %v446 = vld [vmem:[%s4 + $0x20] sm:$0xf]
        %v447 = vld [vmem:[%s4 + $0x24] sm:$0xf]
        %v448 = vld [vmem:[%s4 + $0x28] sm:$0xf]
        %v449 = vld [vmem:[%s4 + $0x2c] sm:$0xf]
        %v450 = vld [vmem:[%s4 + $0x30] sm:$0xf]
        %v451 = vld [vmem:[%s4 + $0x34] sm:$0xf]
        %v452 = vld [vmem:[%s4 + $0x38] sm:$0xf]
        %v453 = vld [vmem:[%s4 + $0x3c] sm:$0xf]
        %v454 = vld [vmem:[%s5] sm:$0x1]
        %v456 = vperm.slane %v454, 0
        %v474 = vunpack.c.l.b16 %v438
        %v475 = vunpack.c.l.b16 %v439
        %v476 = vunpack.c.l.b16 %v440
        %v477 = vunpack.c.l.b16 %v441
        %v478 = vunpack.c.l.b16 %v442
        %v479 = vunpack.c.l.b16 %v443
        %v480 = vunpack.c.l.b16 %v444
        %v481 = vunpack.c.l.b16 %v445
        %v482 = vunpack.c.l.b16 %v446
        %v483 = vunpack.c.l.b16 %v447
        %v484 = vunpack.c.l.b16 %v448
        %v485 = vunpack.c.l.b16 %v449
        %v486 = vunpack.c.l.b16 %v450
        %v487 = vunpack.c.l.b16 %v451
        %v488 = vunpack.c.l.b16 %v452
        %v489 = vunpack.c.l.b16 %v453
        %v490 = vpack.c.b16 %v475, %v474
        %v491 = vpack.c.b16 %v477, %v476
        %v492 = vpack.c.b16 %v479, %v478
        %v493 = vpack.c.b16 %v481, %v480
        %v494 = vpack.c.b16 %v483, %v482
        %v495 = vpack.c.b16 %v485, %v484
        %v496 = vpack.c.b16 %v487, %v486
        %v497 = vpack.c.b16 %v489, %v488
        %506 = vmatpush.bf16.msra.mxu0 %v497
        %507 = vmatpush.bf16.msra.mxu0 %v496
        %508 = vmatpush.bf16.msra.mxu0 %v495
        %509 = vmatpush.bf16.msra.mxu0 %v494
        %510 = vmatpush.bf16.msra.mxu0 %v493
        %511 = vmatpush.bf16.msra.mxu0 %v492
        %512 = vmatpush.bf16.msra.mxu0 %v491
        %513 = vmatpush.bf16.msra.mxu0 %v490
        %514 = vmatmul.bf16.gmra.mxu0 %v437
        %v515 = vpop.f32.mrf.mxu0
        %v516 = vadd.f32 %v456, %v515
        %v517 = vpop.f32.mrf.mxu0
        %v518 = vadd.f32 %v456, %v517
        %519 = vdwg.mxu0
        %v520 = vld [vmem:[%s386] sm:$0xff]
        %v521 = vld [vmem:[%s6] sm:$0xff]
        %v522 = vld [vmem:[%s6 + $0x8] sm:$0xff]
        %v523 = vld [vmem:[%s6 + $0x10] sm:$0xff]
        %v524 = vld [vmem:[%s6 + $0x18] sm:$0xff]
        %v525 = vld [vmem:[%s6 + $0x20] sm:$0xff]
        %v526 = vld [vmem:[%s6 + $0x28] sm:$0xff]
        %v527 = vld [vmem:[%s6 + $0x30] sm:$0xff]
        %v528 = vld [vmem:[%s6 + $0x38] sm:$0xff]
        %v529 = vld [vmem:[%s6 + $0x40] sm:$0xff]
        %v530 = vld [vmem:[%s6 + $0x48] sm:$0xff]
        %v531 = vld [vmem:[%s6 + $0x50] sm:$0xff]
        %v532 = vld [vmem:[%s6 + $0x58] sm:$0xff]
        %v533 = vld [vmem:[%s6 + $0x60] sm:$0xff]
        %v534 = vld [vmem:[%s6 + $0x68] sm:$0xff]
        %v535 = vld [vmem:[%s6 + $0x70] sm:$0xff]
        %v536 = vld [vmem:[%s6 + $0x78] sm:$0xff]
        %v537 = vld [vmem:[%s7] sm:$0xff]
        %v538 = vld [vmem:[%s7 + $0x8] sm:$0xff]
        %v539 = vld [vmem:[%s7 + $0x10] sm:$0xff]
        %v540 = vld [vmem:[%s7 + $0x18] sm:$0xff]
        %v541 = vld [vmem:[%s7 + $0x20] sm:$0xff]
        %v542 = vld [vmem:[%s7 + $0x28] sm:$0xff]
        %v543 = vld [vmem:[%s7 + $0x30] sm:$0xff]
        %v544 = vld [vmem:[%s7 + $0x38] sm:$0xff]
        %v545 = vld [vmem:[%s7 + $0x40] sm:$0xff]
        %v546 = vld [vmem:[%s7 + $0x48] sm:$0xff]
        %v547 = vld [vmem:[%s7 + $0x50] sm:$0xff]
        %v548 = vld [vmem:[%s7 + $0x58] sm:$0xff]
        %v549 = vld [vmem:[%s7 + $0x60] sm:$0xff]
        %v550 = vld [vmem:[%s7 + $0x68] sm:$0xff]
        %v551 = vld [vmem:[%s7 + $0x70] sm:$0xff]
        %v552 = vld [vmem:[%s7 + $0x78] sm:$0xff]
        %554 = vset.pattern.permute.xlu0 0
        %555 = vperm.xlu0 %554, %v521
        %v556 = vpop.permute.xlu0 %555
        %559 = vset.pattern.permute.xlu0 0
        %560 = vperm.xlu0 %559, %v522
        %v561 = vpop.permute.xlu0 %560
        %564 = vset.pattern.permute.xlu0 0
        %565 = vperm.xlu0 %564, %v523
        %v566 = vpop.permute.xlu0 %565
        %569 = vset.pattern.permute.xlu0 0
        %570 = vperm.xlu0 %569, %v524
        %v571 = vpop.permute.xlu0 %570
        %574 = vset.pattern.permute.xlu0 0
        %575 = vperm.xlu0 %574, %v525
        %v576 = vpop.permute.xlu0 %575
        %579 = vset.pattern.permute.xlu0 0
        %580 = vperm.xlu0 %579, %v526
        %v581 = vpop.permute.xlu0 %580
        %584 = vset.pattern.permute.xlu0 0
        %585 = vperm.xlu0 %584, %v527
        %v586 = vpop.permute.xlu0 %585
        %589 = vset.pattern.permute.xlu0 0
        %590 = vperm.xlu0 %589, %v528
        %v591 = vpop.permute.xlu0 %590
        %594 = vset.pattern.permute.xlu0 0
        %595 = vperm.xlu0 %594, %v529
        %v596 = vpop.permute.xlu0 %595
        %599 = vset.pattern.permute.xlu0 0
        %600 = vperm.xlu0 %599, %v530
        %v601 = vpop.permute.xlu0 %600
        %604 = vset.pattern.permute.xlu0 0
        %605 = vperm.xlu0 %604, %v531
        %v606 = vpop.permute.xlu0 %605
        %609 = vset.pattern.permute.xlu0 0
        %610 = vperm.xlu0 %609, %v532
        %v611 = vpop.permute.xlu0 %610
        %614 = vset.pattern.permute.xlu0 0
        %615 = vperm.xlu0 %614, %v533
        %v616 = vpop.permute.xlu0 %615
        %619 = vset.pattern.permute.xlu0 0
        %620 = vperm.xlu0 %619, %v534
        %v621 = vpop.permute.xlu0 %620
        %624 = vset.pattern.permute.xlu0 0
        %625 = vperm.xlu0 %624, %v535
        %v626 = vpop.permute.xlu0 %625
        %629 = vset.pattern.permute.xlu0 0
        %630 = vperm.xlu0 %629, %v536
        %v631 = vpop.permute.xlu0 %630
        %v634 = vperm.slane %v520, 0
        %v635 = vperm.slane %v520, 2
        %v636 = vperm.slane %v520, 4
        %v637 = vperm.slane %v520, 6
        %v642 = vperm.slane %v634, 0
        %v643 = vperm.slane %v635, 0
        %v644 = vperm.slane %v636, 0
        %v645 = vperm.slane %v637, 0
        %v646 = vmul.f32 %v556, %v642
        %v647 = vmul.f32 %v556, %v643
        %v648 = vmul.f32 %v556, %v644
        %v649 = vmul.f32 %v556, %v645
        %v650 = vmul.f32 %v561, %v642
        %v651 = vmul.f32 %v561, %v643
        %v652 = vmul.f32 %v561, %v644
        %v653 = vmul.f32 %v561, %v645
        %v654 = vmul.f32 %v566, %v642
        %v655 = vmul.f32 %v566, %v643
        %v656 = vmul.f32 %v566, %v644
        %v657 = vmul.f32 %v566, %v645
        %v658 = vmul.f32 %v571, %v642
        %v659 = vmul.f32 %v571, %v643
        %v660 = vmul.f32 %v571, %v644
        %v661 = vmul.f32 %v571, %v645
        %v662 = vmul.f32 %v576, %v642
        %v663 = vmul.f32 %v576, %v643
        %v664 = vmul.f32 %v576, %v644
        %v665 = vmul.f32 %v576, %v645
        %v666 = vmul.f32 %v581, %v642
        %v667 = vmul.f32 %v581, %v643
        %v668 = vmul.f32 %v581, %v644
        %v669 = vmul.f32 %v581, %v645
        %v670 = vmul.f32 %v586, %v642
        %v671 = vmul.f32 %v586, %v643
        %v672 = vmul.f32 %v586, %v644
        %v673 = vmul.f32 %v586, %v645
        %v674 = vmul.f32 %v591, %v642
        %v675 = vmul.f32 %v591, %v643
        %v676 = vmul.f32 %v591, %v644
        %v677 = vmul.f32 %v591, %v645
        %v678 = vmul.f32 %v596, %v642
        %v679 = vmul.f32 %v596, %v643
        %v680 = vmul.f32 %v596, %v644
        %v681 = vmul.f32 %v596, %v645
        %v682 = vmul.f32 %v601, %v642
        %v683 = vmul.f32 %v601, %v643
        %v684 = vmul.f32 %v601, %v644
        %v685 = vmul.f32 %v601, %v645
        %v686 = vmul.f32 %v606, %v642
        %v687 = vmul.f32 %v606, %v643
        %v688 = vmul.f32 %v606, %v644
        %v689 = vmul.f32 %v606, %v645
        %v690 = vmul.f32 %v611, %v642
        %v691 = vmul.f32 %v611, %v643
        %v692 = vmul.f32 %v611, %v644
        %v693 = vmul.f32 %v611, %v645
        %v694 = vmul.f32 %v616, %v642
        %v695 = vmul.f32 %v616, %v643
        %v696 = vmul.f32 %v616, %v644
        %v697 = vmul.f32 %v616, %v645
        %v698 = vmul.f32 %v621, %v642
        %v699 = vmul.f32 %v621, %v643
        %v700 = vmul.f32 %v621, %v644
        %v701 = vmul.f32 %v621, %v645
        %v702 = vmul.f32 %v626, %v642
        %v703 = vmul.f32 %v626, %v643
        %v704 = vmul.f32 %v626, %v644
        %v705 = vmul.f32 %v626, %v645
        %v706 = vmul.f32 %v631, %v642
        %v707 = vmul.f32 %v631, %v643
        %v708 = vmul.f32 %v631, %v644
        %v709 = vmul.f32 %v631, %v645
        %711 = vset.pattern.permute.xlu0 0
        %712 = vperm.xlu0 %711, %v537
        %v713 = vpop.permute.xlu0 %712
        %716 = vset.pattern.permute.xlu0 0
        %717 = vperm.xlu0 %716, %v538
        %v718 = vpop.permute.xlu0 %717
        %721 = vset.pattern.permute.xlu0 0
        %722 = vperm.xlu0 %721, %v539
        %v723 = vpop.permute.xlu0 %722
        %726 = vset.pattern.permute.xlu0 0
        %727 = vperm.xlu0 %726, %v540
        %v728 = vpop.permute.xlu0 %727
        %731 = vset.pattern.permute.xlu0 0
        %732 = vperm.xlu0 %731, %v541
        %v733 = vpop.permute.xlu0 %732
        %736 = vset.pattern.permute.xlu0 0
        %737 = vperm.xlu0 %736, %v542
        %v738 = vpop.permute.xlu0 %737
        %741 = vset.pattern.permute.xlu0 0
        %742 = vperm.xlu0 %741, %v543
        %v743 = vpop.permute.xlu0 %742
        %746 = vset.pattern.permute.xlu0 0
        %747 = vperm.xlu0 %746, %v544
        %v748 = vpop.permute.xlu0 %747
        %751 = vset.pattern.permute.xlu0 0
        %752 = vperm.xlu0 %751, %v545
        %v753 = vpop.permute.xlu0 %752
        %756 = vset.pattern.permute.xlu0 0
        %757 = vperm.xlu0 %756, %v546
        %v758 = vpop.permute.xlu0 %757
        %761 = vset.pattern.permute.xlu0 0
        %762 = vperm.xlu0 %761, %v547
        %v763 = vpop.permute.xlu0 %762
        %766 = vset.pattern.permute.xlu0 0
        %767 = vperm.xlu0 %766, %v548
        %v768 = vpop.permute.xlu0 %767
        %771 = vset.pattern.permute.xlu0 0
        %772 = vperm.xlu0 %771, %v549
        %v773 = vpop.permute.xlu0 %772
        %776 = vset.pattern.permute.xlu0 0
        %777 = vperm.xlu0 %776, %v550
        %v778 = vpop.permute.xlu0 %777
        %781 = vset.pattern.permute.xlu0 0
        %782 = vperm.xlu0 %781, %v551
        %v783 = vpop.permute.xlu0 %782
        %786 = vset.pattern.permute.xlu0 0
        %787 = vperm.xlu0 %786, %v552
        %v788 = vpop.permute.xlu0 %787
        %v790 = vadd.f32 %v713, %v646
        %v791 = vadd.f32 %v713, %v647
        %v792 = vadd.f32 %v713, %v648
        %v793 = vadd.f32 %v713, %v649
        %v794 = vadd.f32 %v718, %v650
        %v795 = vadd.f32 %v718, %v651
        %v796 = vadd.f32 %v718, %v652
        %v797 = vadd.f32 %v718, %v653
        %v798 = vadd.f32 %v723, %v654
        %v799 = vadd.f32 %v723, %v655
        %v800 = vadd.f32 %v723, %v656
        %v801 = vadd.f32 %v723, %v657
        %v802 = vadd.f32 %v728, %v658
        %v803 = vadd.f32 %v728, %v659
        %v804 = vadd.f32 %v728, %v660
        %v805 = vadd.f32 %v728, %v661
        %v806 = vadd.f32 %v733, %v662
        %v807 = vadd.f32 %v733, %v663
        %v808 = vadd.f32 %v733, %v664
        %v809 = vadd.f32 %v733, %v665
        %v810 = vadd.f32 %v738, %v666
        %v811 = vadd.f32 %v738, %v667
        %v812 = vadd.f32 %v738, %v668
        %v813 = vadd.f32 %v738, %v669
        %v814 = vadd.f32 %v743, %v670
        %v815 = vadd.f32 %v743, %v671
        %v816 = vadd.f32 %v743, %v672
        %v817 = vadd.f32 %v743, %v673
        %v818 = vadd.f32 %v748, %v674
        %v819 = vadd.f32 %v748, %v675
        %v820 = vadd.f32 %v748, %v676
        %v821 = vadd.f32 %v748, %v677
        %v822 = vadd.f32 %v753, %v678
        %v823 = vadd.f32 %v753, %v679
        %v824 = vadd.f32 %v753, %v680
        %v825 = vadd.f32 %v753, %v681
        %v826 = vadd.f32 %v758, %v682
        %v827 = vadd.f32 %v758, %v683
        %v828 = vadd.f32 %v758, %v684
        %v829 = vadd.f32 %v758, %v685
        %v830 = vadd.f32 %v763, %v686
        %v831 = vadd.f32 %v763, %v687
        %v832 = vadd.f32 %v763, %v688
        %v833 = vadd.f32 %v763, %v689
        %v834 = vadd.f32 %v768, %v690
        %v835 = vadd.f32 %v768, %v691
        %v836 = vadd.f32 %v768, %v692
        %v837 = vadd.f32 %v768, %v693
        %v838 = vadd.f32 %v773, %v694
        %v839 = vadd.f32 %v773, %v695
        %v840 = vadd.f32 %v773, %v696
        %v841 = vadd.f32 %v773, %v697
        %v842 = vadd.f32 %v778, %v698
        %v843 = vadd.f32 %v778, %v699
        %v844 = vadd.f32 %v778, %v700
        %v845 = vadd.f32 %v778, %v701
        %v846 = vadd.f32 %v783, %v702
        %v847 = vadd.f32 %v783, %v703
        %v848 = vadd.f32 %v783, %v704
        %v849 = vadd.f32 %v783, %v705
        %v850 = vadd.f32 %v788, %v706
        %v851 = vadd.f32 %v788, %v707
        %v852 = vadd.f32 %v788, %v708
        %v853 = vadd.f32 %v788, %v709
        %854 = vset.pattern.permute.xlu0 1
        %855 = vperm.xlu0 %854, %v521
        %v856 = vpop.permute.xlu0 %855
        %858 = vset.pattern.permute.xlu0 1
        %859 = vperm.xlu0 %858, %v522
        %v860 = vpop.permute.xlu0 %859
        %862 = vset.pattern.permute.xlu0 1
        %863 = vperm.xlu0 %862, %v523
        %v864 = vpop.permute.xlu0 %863
        %866 = vset.pattern.permute.xlu0 1
        %867 = vperm.xlu0 %866, %v524
        %v868 = vpop.permute.xlu0 %867
        %870 = vset.pattern.permute.xlu0 1
        %871 = vperm.xlu0 %870, %v525
        %v872 = vpop.permute.xlu0 %871
        %874 = vset.pattern.permute.xlu0 1
        %875 = vperm.xlu0 %874, %v526
        %v876 = vpop.permute.xlu0 %875
        %878 = vset.pattern.permute.xlu0 1
        %879 = vperm.xlu0 %878, %v527
        %v880 = vpop.permute.xlu0 %879
        %882 = vset.pattern.permute.xlu0 1
        %883 = vperm.xlu0 %882, %v528
        %v884 = vpop.permute.xlu0 %883
        %886 = vset.pattern.permute.xlu0 1
        %887 = vperm.xlu0 %886, %v529
        %v888 = vpop.permute.xlu0 %887
        %890 = vset.pattern.permute.xlu0 1
        %891 = vperm.xlu0 %890, %v530
        %v892 = vpop.permute.xlu0 %891
        %894 = vset.pattern.permute.xlu0 1
        %895 = vperm.xlu0 %894, %v531
        %v896 = vpop.permute.xlu0 %895
        %898 = vset.pattern.permute.xlu0 1
        %899 = vperm.xlu0 %898, %v532
        %v900 = vpop.permute.xlu0 %899
        %902 = vset.pattern.permute.xlu0 1
        %903 = vperm.xlu0 %902, %v533
        %v904 = vpop.permute.xlu0 %903
        %906 = vset.pattern.permute.xlu0 1
        %907 = vperm.xlu0 %906, %v534
        %v908 = vpop.permute.xlu0 %907
        %910 = vset.pattern.permute.xlu0 1
        %911 = vperm.xlu0 %910, %v535
        %v912 = vpop.permute.xlu0 %911
        %914 = vset.pattern.permute.xlu0 1
        %915 = vperm.xlu0 %914, %v536
        %v916 = vpop.permute.xlu0 %915
        %v918 = vperm.slane %v520, 1
        %v919 = vperm.slane %v520, 3
        %v920 = vperm.slane %v520, 5
        %v921 = vperm.slane %v520, 7
        %v926 = vperm.slane %v918, 1
        %v927 = vperm.slane %v919, 1
        %v928 = vperm.slane %v920, 1
        %v929 = vperm.slane %v921, 1
        %v930 = vmul.f32 %v856, %v926
        %v931 = vmul.f32 %v856, %v927
        %v932 = vmul.f32 %v856, %v928
        %v933 = vmul.f32 %v856, %v929
        %v934 = vmul.f32 %v860, %v926
        %v935 = vmul.f32 %v860, %v927
        %v936 = vmul.f32 %v860, %v928
        %v937 = vmul.f32 %v860, %v929
        %v938 = vmul.f32 %v864, %v926
        %v939 = vmul.f32 %v864, %v927
        %v940 = vmul.f32 %v864, %v928
        %v941 = vmul.f32 %v864, %v929
        %v942 = vmul.f32 %v868, %v926
        %v943 = vmul.f32 %v868, %v927
        %v944 = vmul.f32 %v868, %v928
        %v945 = vmul.f32 %v868, %v929
        %v946 = vmul.f32 %v872, %v926
        %v947 = vmul.f32 %v872, %v927
        %v948 = vmul.f32 %v872, %v928
        %v949 = vmul.f32 %v872, %v929
        %v950 = vmul.f32 %v876, %v926
        %v951 = vmul.f32 %v876, %v927
        %v952 = vmul.f32 %v876, %v928
        %v953 = vmul.f32 %v876, %v929
        %v954 = vmul.f32 %v880, %v926
        %v955 = vmul.f32 %v880, %v927
        %v956 = vmul.f32 %v880, %v928
        %v957 = vmul.f32 %v880, %v929
        %v958 = vmul.f32 %v884, %v926
        %v959 = vmul.f32 %v884, %v927
        %v960 = vmul.f32 %v884, %v928
        %v961 = vmul.f32 %v884, %v929
        %v962 = vmul.f32 %v888, %v926
        %v963 = vmul.f32 %v888, %v927
        %v964 = vmul.f32 %v888, %v928
        %v965 = vmul.f32 %v888, %v929
        %v966 = vmul.f32 %v892, %v926
        %v967 = vmul.f32 %v892, %v927
        %v968 = vmul.f32 %v892, %v928
        %v969 = vmul.f32 %v892, %v929
        %v970 = vmul.f32 %v896, %v926
        %v971 = vmul.f32 %v896, %v927
        %v972 = vmul.f32 %v896, %v928
        %v973 = vmul.f32 %v896, %v929
        %v974 = vmul.f32 %v900, %v926
        %v975 = vmul.f32 %v900, %v927
        %v976 = vmul.f32 %v900, %v928
        %v977 = vmul.f32 %v900, %v929
        %v978 = vmul.f32 %v904, %v926
        %v979 = vmul.f32 %v904, %v927
        %v980 = vmul.f32 %v904, %v928
        %v981 = vmul.f32 %v904, %v929
        %v982 = vmul.f32 %v908, %v926
        %v983 = vmul.f32 %v908, %v927
        %v984 = vmul.f32 %v908, %v928
        %v985 = vmul.f32 %v908, %v929
        %v986 = vmul.f32 %v912, %v926
        %v987 = vmul.f32 %v912, %v927
        %v988 = vmul.f32 %v912, %v928
        %v989 = vmul.f32 %v912, %v929
        %v990 = vmul.f32 %v916, %v926
        %v991 = vmul.f32 %v916, %v927
        %v992 = vmul.f32 %v916, %v928
        %v993 = vmul.f32 %v916, %v929
        %v994 = vadd.f32 %v790, %v930
        %v995 = vadd.f32 %v791, %v931
        %v996 = vadd.f32 %v792, %v932
        %v997 = vadd.f32 %v793, %v933
        %v998 = vadd.f32 %v794, %v934
        %v999 = vadd.f32 %v795, %v935
        %v1000 = vadd.f32 %v796, %v936
        %v1001 = vadd.f32 %v797, %v937
        %v1002 = vadd.f32 %v798, %v938
        %v1003 = vadd.f32 %v799, %v939
        %v1004 = vadd.f32 %v800, %v940
        %v1005 = vadd.f32 %v801, %v941
        %v1006 = vadd.f32 %v802, %v942
        %v1007 = vadd.f32 %v803, %v943
        %v1008 = vadd.f32 %v804, %v944
        %v1009 = vadd.f32 %v805, %v945
        %v1010 = vadd.f32 %v806, %v946
        %v1011 = vadd.f32 %v807, %v947
        %v1012 = vadd.f32 %v808, %v948
        %v1013 = vadd.f32 %v809, %v949
        %v1014 = vadd.f32 %v810, %v950
        %v1015 = vadd.f32 %v811, %v951
        %v1016 = vadd.f32 %v812, %v952
        %v1017 = vadd.f32 %v813, %v953
        %v1018 = vadd.f32 %v814, %v954
        %v1019 = vadd.f32 %v815, %v955
        %v1020 = vadd.f32 %v816, %v956
        %v1021 = vadd.f32 %v817, %v957
        %v1022 = vadd.f32 %v818, %v958
        %v1023 = vadd.f32 %v819, %v959
        %v1024 = vadd.f32 %v820, %v960
        %v1025 = vadd.f32 %v821, %v961
        %v1026 = vadd.f32 %v822, %v962
        %v1027 = vadd.f32 %v823, %v963
        %v1028 = vadd.f32 %v824, %v964
        %v1029 = vadd.f32 %v825, %v965
        %v1030 = vadd.f32 %v826, %v966
        %v1031 = vadd.f32 %v827, %v967
        %v1032 = vadd.f32 %v828, %v968
        %v1033 = vadd.f32 %v829, %v969
        %v1034 = vadd.f32 %v830, %v970
        %v1035 = vadd.f32 %v831, %v971
        %v1036 = vadd.f32 %v832, %v972
        %v1037 = vadd.f32 %v833, %v973
        %v1038 = vadd.f32 %v834, %v974
        %v1039 = vadd.f32 %v835, %v975
        %v1040 = vadd.f32 %v836, %v976
        %v1041 = vadd.f32 %v837, %v977
        %v1042 = vadd.f32 %v838, %v978
        %v1043 = vadd.f32 %v839, %v979
        %v1044 = vadd.f32 %v840, %v980
        %v1045 = vadd.f32 %v841, %v981
        %v1046 = vadd.f32 %v842, %v982
        %v1047 = vadd.f32 %v843, %v983
        %v1048 = vadd.f32 %v844, %v984
        %v1049 = vadd.f32 %v845, %v985
        %v1050 = vadd.f32 %v846, %v986
        %v1051 = vadd.f32 %v847, %v987
        %v1052 = vadd.f32 %v848, %v988
        %v1053 = vadd.f32 %v849, %v989
        %v1054 = vadd.f32 %v850, %v990
        %v1055 = vadd.f32 %v851, %v991
        %v1056 = vadd.f32 %v852, %v992
        %v1057 = vadd.f32 %v853, %v993
        %v1058 = vtanh.pop %v994
        %v1059 = vtanh.pop %v995
        %v1060 = vtanh.pop %v996
        %v1061 = vtanh.pop %v997
        %v1062 = vtanh.pop %v998
        %v1063 = vtanh.pop %v999
        %v1064 = vtanh.pop %v1000
        %v1065 = vtanh.pop %v1001
        %v1066 = vtanh.pop %v1002
        %v1067 = vtanh.pop %v1003
        %v1068 = vtanh.pop %v1004
        %v1069 = vtanh.pop %v1005
        %v1070 = vtanh.pop %v1006
        %v1071 = vtanh.pop %v1007
        %v1072 = vtanh.pop %v1008
        %v1073 = vtanh.pop %v1009
        %v1074 = vtanh.pop %v1010
        %v1075 = vtanh.pop %v1011
        %v1076 = vtanh.pop %v1012
        %v1077 = vtanh.pop %v1013
        %v1078 = vtanh.pop %v1014
        %v1079 = vtanh.pop %v1015
        %v1080 = vtanh.pop %v1016
        %v1081 = vtanh.pop %v1017
        %v1082 = vtanh.pop %v1018
        %v1083 = vtanh.pop %v1019
        %v1084 = vtanh.pop %v1020
        %v1085 = vtanh.pop %v1021
        %v1086 = vtanh.pop %v1022
        %v1087 = vtanh.pop %v1023
        %v1088 = vtanh.pop %v1024
        %v1089 = vtanh.pop %v1025
        %v1090 = vtanh.pop %v1026
        %v1091 = vtanh.pop %v1027
        %v1092 = vtanh.pop %v1028
        %v1093 = vtanh.pop %v1029
        %v1094 = vtanh.pop %v1030
        %v1095 = vtanh.pop %v1031
        %v1096 = vtanh.pop %v1032
        %v1097 = vtanh.pop %v1033
        %v1098 = vtanh.pop %v1034
        %v1099 = vtanh.pop %v1035
        %v1100 = vtanh.pop %v1036
        %v1101 = vtanh.pop %v1037
        %v1102 = vtanh.pop %v1038
        %v1103 = vtanh.pop %v1039
        %v1104 = vtanh.pop %v1040
        %v1105 = vtanh.pop %v1041
        %v1106 = vtanh.pop %v1042
        %v1107 = vtanh.pop %v1043
        %v1108 = vtanh.pop %v1044
        %v1109 = vtanh.pop %v1045
        %v1110 = vtanh.pop %v1046
        %v1111 = vtanh.pop %v1047
        %v1112 = vtanh.pop %v1048
        %v1113 = vtanh.pop %v1049
        %v1114 = vtanh.pop %v1050
        %v1115 = vtanh.pop %v1051
        %v1116 = vtanh.pop %v1052
        %v1117 = vtanh.pop %v1053
        %v1118 = vtanh.pop %v1054
        %v1119 = vtanh.pop %v1055
        %v1120 = vtanh.pop %v1056
        %v1121 = vtanh.pop %v1057
        %v1122 = vld [vmem:[%s8] sm:$0xf]
        %v1123 = vld [vmem:[%s8 + $0x4] sm:$0xf]
        %v1124 = vld [vmem:[%s8 + $0x8] sm:$0xf]
        %v1125 = vld [vmem:[%s8 + $0xc] sm:$0xf]
        %v1126 = vld [vmem:[%s8 + $0x10] sm:$0xf]
        %v1127 = vld [vmem:[%s8 + $0x14] sm:$0xf]
        %v1128 = vld [vmem:[%s8 + $0x18] sm:$0xf]
        %v1129 = vld [vmem:[%s8 + $0x1c] sm:$0xf]
        %v1130 = vld [vmem:[%s8 + $0x20] sm:$0xf]
        %v1131 = vld [vmem:[%s8 + $0x24] sm:$0xf]
        %v1132 = vld [vmem:[%s8 + $0x28] sm:$0xf]
        %v1133 = vld [vmem:[%s8 + $0x2c] sm:$0xf]
        %v1134 = vld [vmem:[%s8 + $0x30] sm:$0xf]
        %v1135 = vld [vmem:[%s8 + $0x34] sm:$0xf]
        %v1136 = vld [vmem:[%s8 + $0x38] sm:$0xf]
        %v1137 = vld [vmem:[%s8 + $0x3c] sm:$0xf]
        %v1138 = vpack.c.bf16 %v1062, %v1058
        %v1139 = vpack.c.bf16 %v1063, %v1059
        %v1140 = vpack.c.bf16 %v1064, %v1060
        %v1141 = vpack.c.bf16 %v1065, %v1061
        %v1142 = vpack.c.bf16 %v1070, %v1066
        %v1143 = vpack.c.bf16 %v1071, %v1067
        %v1144 = vpack.c.bf16 %v1072, %v1068
        %v1145 = vpack.c.bf16 %v1073, %v1069
        %v1146 = vpack.c.bf16 %v1078, %v1074
        %v1147 = vpack.c.bf16 %v1079, %v1075
        %v1148 = vpack.c.bf16 %v1080, %v1076
        %v1149 = vpack.c.bf16 %v1081, %v1077
        %v1150 = vpack.c.bf16 %v1086, %v1082
        %v1151 = vpack.c.bf16 %v1087, %v1083
        %v1152 = vpack.c.bf16 %v1088, %v1084
        %v1153 = vpack.c.bf16 %v1089, %v1085
        %v1154 = vpack.c.bf16 %v1094, %v1090
        %v1155 = vpack.c.bf16 %v1095, %v1091
        %v1156 = vpack.c.bf16 %v1096, %v1092
        %v1157 = vpack.c.bf16 %v1097, %v1093
        %v1158 = vpack.c.bf16 %v1102, %v1098
        %v1159 = vpack.c.bf16 %v1103, %v1099
        %v1160 = vpack.c.bf16 %v1104, %v1100
        %v1161 = vpack.c.bf16 %v1105, %v1101
        %v1162 = vpack.c.bf16 %v1110, %v1106
        %v1163 = vpack.c.bf16 %v1111, %v1107
        %v1164 = vpack.c.bf16 %v1112, %v1108
        %v1165 = vpack.c.bf16 %v1113, %v1109
        %v1166 = vpack.c.bf16 %v1118, %v1114
        %v1167 = vpack.c.bf16 %v1119, %v1115
        %v1168 = vpack.c.bf16 %v1120, %v1116
        %v1169 = vpack.c.bf16 %v1121, %v1117
        %v1170 = vld [vmem:[%s9] sm:$0xff]
        %v1171 = vld [vmem:[%s9 + $0x8] sm:$0xff]
        %v1172 = vld [vmem:[%s9 + $0x10] sm:$0xff]
        %v1173 = vld [vmem:[%s9 + $0x18] sm:$0xff]
        %v1174 = vld [vmem:[%s9 + $0x20] sm:$0xff]
        %v1175 = vld [vmem:[%s9 + $0x28] sm:$0xff]
        %v1176 = vld [vmem:[%s9 + $0x30] sm:$0xff]
        %v1177 = vld [vmem:[%s9 + $0x38] sm:$0xff]
        %v1178 = vld [vmem:[%s9 + $0x40] sm:$0xff]
        %v1179 = vld [vmem:[%s9 + $0x48] sm:$0xff]
        %v1180 = vld [vmem:[%s9 + $0x50] sm:$0xff]
        %v1181 = vld [vmem:[%s9 + $0x58] sm:$0xff]
        %v1182 = vld [vmem:[%s9 + $0x60] sm:$0xff]
        %v1183 = vld [vmem:[%s9 + $0x68] sm:$0xff]
        %v1184 = vld [vmem:[%s9 + $0x70] sm:$0xff]
        %v1185 = vld [vmem:[%s9 + $0x78] sm:$0xff]
        %1187 = vset.pattern.permute.xlu0 0
        %1188 = vperm.xlu0 %1187, %v1170
        %v1189 = vpop.permute.xlu0 %1188
        %1192 = vset.pattern.permute.xlu0 0
        %1193 = vperm.xlu0 %1192, %v1171
        %v1194 = vpop.permute.xlu0 %1193
        %1197 = vset.pattern.permute.xlu0 0
        %1198 = vperm.xlu0 %1197, %v1172
        %v1199 = vpop.permute.xlu0 %1198
        %1202 = vset.pattern.permute.xlu0 0
        %1203 = vperm.xlu0 %1202, %v1173
        %v1204 = vpop.permute.xlu0 %1203
        %1207 = vset.pattern.permute.xlu0 0
        %1208 = vperm.xlu0 %1207, %v1174
        %v1209 = vpop.permute.xlu0 %1208
        %1212 = vset.pattern.permute.xlu0 0
        %1213 = vperm.xlu0 %1212, %v1175
        %v1214 = vpop.permute.xlu0 %1213
        %1217 = vset.pattern.permute.xlu0 0
        %1218 = vperm.xlu0 %1217, %v1176
        %v1219 = vpop.permute.xlu0 %1218
        %1222 = vset.pattern.permute.xlu0 0
        %1223 = vperm.xlu0 %1222, %v1177
        %v1224 = vpop.permute.xlu0 %1223
        %1227 = vset.pattern.permute.xlu0 0
        %1228 = vperm.xlu0 %1227, %v1178
        %v1229 = vpop.permute.xlu0 %1228
        %1232 = vset.pattern.permute.xlu0 0
        %1233 = vperm.xlu0 %1232, %v1179
        %v1234 = vpop.permute.xlu0 %1233
        %1237 = vset.pattern.permute.xlu0 0
        %1238 = vperm.xlu0 %1237, %v1180
        %v1239 = vpop.permute.xlu0 %1238
        %1242 = vset.pattern.permute.xlu0 0
        %1243 = vperm.xlu0 %1242, %v1181
        %v1244 = vpop.permute.xlu0 %1243
        %1247 = vset.pattern.permute.xlu0 0
        %1248 = vperm.xlu0 %1247, %v1182
        %v1249 = vpop.permute.xlu0 %1248
        %1252 = vset.pattern.permute.xlu0 0
        %1253 = vperm.xlu0 %1252, %v1183
        %v1254 = vpop.permute.xlu0 %1253
        %1257 = vset.pattern.permute.xlu0 0
        %1258 = vperm.xlu0 %1257, %v1184
        %v1259 = vpop.permute.xlu0 %1258
        %1262 = vset.pattern.permute.xlu0 0
        %1263 = vperm.xlu0 %1262, %v1185
        %v1264 = vpop.permute.xlu0 %1263
        %v1282 = vunpack.c.l.b16 %v1122
        %v1283 = vunpack.c.l.b16 %v1123
        %v1284 = vunpack.c.l.b16 %v1124
        %v1285 = vunpack.c.l.b16 %v1125
        %v1286 = vunpack.c.l.b16 %v1126
        %v1287 = vunpack.c.l.b16 %v1127
        %v1288 = vunpack.c.l.b16 %v1128
        %v1289 = vunpack.c.l.b16 %v1129
        %v1290 = vunpack.c.l.b16 %v1130
        %v1291 = vunpack.c.l.b16 %v1131
        %v1292 = vunpack.c.l.b16 %v1132
        %v1293 = vunpack.c.l.b16 %v1133
        %v1294 = vunpack.c.l.b16 %v1134
        %v1295 = vunpack.c.l.b16 %v1135
        %v1296 = vunpack.c.l.b16 %v1136
        %v1297 = vunpack.c.l.b16 %v1137
        %v1298 = vpack.c.b16 %v1283, %v1282
        %v1299 = vpack.c.b16 %v1285, %v1284
        %v1300 = vpack.c.b16 %v1287, %v1286
        %v1301 = vpack.c.b16 %v1289, %v1288
        %v1302 = vpack.c.b16 %v1291, %v1290
        %v1303 = vpack.c.b16 %v1293, %v1292
        %v1304 = vpack.c.b16 %v1295, %v1294
        %v1305 = vpack.c.b16 %v1297, %v1296
        %1314 = vmatpush.bf16.msra.mxu0 %v1166
        %1315 = vmatpush.bf16.msra.mxu0 %v1162
        %1316 = vmatpush.bf16.msra.mxu0 %v1158
        %1317 = vmatpush.bf16.msra.mxu0 %v1154
        %1318 = vmatpush.bf16.msra.mxu0 %v1150
        %1319 = vmatpush.bf16.msra.mxu0 %v1146
        %1320 = vmatpush.bf16.msra.mxu0 %v1142
        %1321 = vmatpush.bf16.msra.mxu0 %v1138
        %1322 = vmatmul.bf16.gmra.mxu0 %v1298
        %v1323 = vpop.f32.mrf.mxu0
        %v1324 = vadd.f32 %v1189, %v1323
        %v1325 = vpop.f32.mrf.mxu0
        %v1326 = vadd.f32 %v1194, %v1325
        %1327 = vmatmul.bf16.gmra.mxu0 %v1299
        %v1328 = vpop.f32.mrf.mxu0
        %v1329 = vadd.f32 %v1199, %v1328
        %v1330 = vpop.f32.mrf.mxu0
        %v1331 = vadd.f32 %v1204, %v1330
        %1332 = vmatmul.bf16.gmra.mxu0 %v1300
        %v1333 = vpop.f32.mrf.mxu0
        %v1334 = vadd.f32 %v1209, %v1333
        %v1335 = vpop.f32.mrf.mxu0
        %v1336 = vadd.f32 %v1214, %v1335
        %1337 = vmatmul.bf16.gmra.mxu0 %v1301
        %v1338 = vpop.f32.mrf.mxu0
        %v1339 = vadd.f32 %v1219, %v1338
        %v1340 = vpop.f32.mrf.mxu0
        %v1341 = vadd.f32 %v1224, %v1340
        %1342 = vmatmul.bf16.gmra.mxu0 %v1302
        %v1343 = vpop.f32.mrf.mxu0
        %v1344 = vadd.f32 %v1229, %v1343
        %v1345 = vpop.f32.mrf.mxu0
        %v1346 = vadd.f32 %v1234, %v1345
        %1347 = vmatmul.bf16.gmra.mxu0 %v1303
        %v1348 = vpop.f32.mrf.mxu0
        %v1349 = vadd.f32 %v1239, %v1348
        %v1350 = vpop.f32.mrf.mxu0
        %v1351 = vadd.f32 %v1244, %v1350
        %1352 = vmatmul.bf16.gmra.mxu0 %v1304
        %v1353 = vpop.f32.mrf.mxu0
        %v1354 = vadd.f32 %v1249, %v1353
        %v1355 = vpop.f32.mrf.mxu0
        %v1356 = vadd.f32 %v1254, %v1355
        %1357 = vmatmul.bf16.gmra.mxu0 %v1305
        %v1358 = vpop.f32.mrf.mxu0
        %v1359 = vadd.f32 %v1259, %v1358
        %v1360 = vpop.f32.mrf.mxu0
        %v1361 = vadd.f32 %v1264, %v1360
        %1362 = vdwg.mxu0
        %1363 = vmatpush.bf16.msra.mxu0 %v1167
        %1364 = vmatpush.bf16.msra.mxu0 %v1163
        %1365 = vmatpush.bf16.msra.mxu0 %v1159
        %1366 = vmatpush.bf16.msra.mxu0 %v1155
        %1367 = vmatpush.bf16.msra.mxu0 %v1151
        %1368 = vmatpush.bf16.msra.mxu0 %v1147
        %1369 = vmatpush.bf16.msra.mxu0 %v1143
        %1370 = vmatpush.bf16.msra.mxu0 %v1139
        %1371 = vmatmul.bf16.gmra.mxu0 %v1298
        %v1372 = vpop.f32.mrf.mxu0
        %v1373 = vadd.f32 %v1189, %v1372
        %v1374 = vpop.f32.mrf.mxu0
        %v1375 = vadd.f32 %v1194, %v1374
        %1376 = vmatmul.bf16.gmra.mxu0 %v1299
        %v1377 = vpop.f32.mrf.mxu0
        %v1378 = vadd.f32 %v1199, %v1377
        %v1379 = vpop.f32.mrf.mxu0
        %v1380 = vadd.f32 %v1204, %v1379
        %1381 = vmatmul.bf16.gmra.mxu0 %v1300
        %v1382 = vpop.f32.mrf.mxu0
        %v1383 = vadd.f32 %v1209, %v1382
        %v1384 = vpop.f32.mrf.mxu0
        %v1385 = vadd.f32 %v1214, %v1384
        %1386 = vmatmul.bf16.gmra.mxu0 %v1301
        %v1387 = vpop.f32.mrf.mxu0
        %v1388 = vadd.f32 %v1219, %v1387
        %v1389 = vpop.f32.mrf.mxu0
        %v1390 = vadd.f32 %v1224, %v1389
        %1391 = vmatmul.bf16.gmra.mxu0 %v1302
        %v1392 = vpop.f32.mrf.mxu0
        %v1393 = vadd.f32 %v1229, %v1392
        %v1394 = vpop.f32.mrf.mxu0
        %v1395 = vadd.f32 %v1234, %v1394
        %1396 = vmatmul.bf16.gmra.mxu0 %v1303
        %v1397 = vpop.f32.mrf.mxu0
        %v1398 = vadd.f32 %v1239, %v1397
        %v1399 = vpop.f32.mrf.mxu0
        %v1400 = vadd.f32 %v1244, %v1399
        %1401 = vmatmul.bf16.gmra.mxu0 %v1304
        %v1402 = vpop.f32.mrf.mxu0
        %v1403 = vadd.f32 %v1249, %v1402
        %v1404 = vpop.f32.mrf.mxu0
        %v1405 = vadd.f32 %v1254, %v1404
        %1406 = vmatmul.bf16.gmra.mxu0 %v1305
        %v1407 = vpop.f32.mrf.mxu0
        %v1408 = vadd.f32 %v1259, %v1407
        %v1409 = vpop.f32.mrf.mxu0
        %v1410 = vadd.f32 %v1264, %v1409
        %1411 = vdwg.mxu0
        %1412 = vmatpush.bf16.msra.mxu0 %v1168
        %1413 = vmatpush.bf16.msra.mxu0 %v1164
        %1414 = vmatpush.bf16.msra.mxu0 %v1160
        %1415 = vmatpush.bf16.msra.mxu0 %v1156
        %1416 = vmatpush.bf16.msra.mxu0 %v1152
        %1417 = vmatpush.bf16.msra.mxu0 %v1148
        %1418 = vmatpush.bf16.msra.mxu0 %v1144
        %1419 = vmatpush.bf16.msra.mxu0 %v1140
        %1420 = vmatmul.bf16.gmra.mxu0 %v1298
        %v1421 = vpop.f32.mrf.mxu0
        %v1422 = vadd.f32 %v1189, %v1421
        %v1423 = vpop.f32.mrf.mxu0
        %v1424 = vadd.f32 %v1194, %v1423
        %1425 = vmatmul.bf16.gmra.mxu0 %v1299
        %v1426 = vpop.f32.mrf.mxu0
        %v1427 = vadd.f32 %v1199, %v1426
        %v1428 = vpop.f32.mrf.mxu0
        %v1429 = vadd.f32 %v1204, %v1428
        %1430 = vmatmul.bf16.gmra.mxu0 %v1300
        %v1431 = vpop.f32.mrf.mxu0
        %v1432 = vadd.f32 %v1209, %v1431
        %v1433 = vpop.f32.mrf.mxu0
        %v1434 = vadd.f32 %v1214, %v1433
        %1435 = vmatmul.bf16.gmra.mxu0 %v1301
        %v1436 = vpop.f32.mrf.mxu0
        %v1437 = vadd.f32 %v1219, %v1436
        %v1438 = vpop.f32.mrf.mxu0
        %v1439 = vadd.f32 %v1224, %v1438
        %1440 = vmatmul.bf16.gmra.mxu0 %v1302
        %v1441 = vpop.f32.mrf.mxu0
        %v1442 = vadd.f32 %v1229, %v1441
        %v1443 = vpop.f32.mrf.mxu0
        %v1444 = vadd.f32 %v1234, %v1443
        %1445 = vmatmul.bf16.gmra.mxu0 %v1303
        %v1446 = vpop.f32.mrf.mxu0
        %v1447 = vadd.f32 %v1239, %v1446
        %v1448 = vpop.f32.mrf.mxu0
        %v1449 = vadd.f32 %v1244, %v1448
        %1450 = vmatmul.bf16.gmra.mxu0 %v1304
        %v1451 = vpop.f32.mrf.mxu0
        %v1452 = vadd.f32 %v1249, %v1451
        %v1453 = vpop.f32.mrf.mxu0
        %v1454 = vadd.f32 %v1254, %v1453
        %1455 = vmatmul.bf16.gmra.mxu0 %v1305
        %v1456 = vpop.f32.mrf.mxu0
        %v1457 = vadd.f32 %v1259, %v1456
        %v1458 = vpop.f32.mrf.mxu0
        %v1459 = vadd.f32 %v1264, %v1458
        %1460 = vdwg.mxu0
        %1461 = vmatpush.bf16.msra.mxu0 %v1169
        %1462 = vmatpush.bf16.msra.mxu0 %v1165
        %1463 = vmatpush.bf16.msra.mxu0 %v1161
        %1464 = vmatpush.bf16.msra.mxu0 %v1157
        %1465 = vmatpush.bf16.msra.mxu0 %v1153
        %1466 = vmatpush.bf16.msra.mxu0 %v1149
        %1467 = vmatpush.bf16.msra.mxu0 %v1145
        %1468 = vmatpush.bf16.msra.mxu0 %v1141
        %1469 = vmatmul.bf16.gmra.mxu0 %v1298
        %v1470 = vpop.f32.mrf.mxu0
        %v1471 = vadd.f32 %v1189, %v1470
        %v1472 = vpop.f32.mrf.mxu0
        %v1473 = vadd.f32 %v1194, %v1472
        %1474 = vmatmul.bf16.gmra.mxu0 %v1299
        %v1475 = vpop.f32.mrf.mxu0
        %v1476 = vadd.f32 %v1199, %v1475
        %v1477 = vpop.f32.mrf.mxu0
        %v1478 = vadd.f32 %v1204, %v1477
        %1479 = vmatmul.bf16.gmra.mxu0 %v1300
        %v1480 = vpop.f32.mrf.mxu0
        %v1481 = vadd.f32 %v1209, %v1480
        %v1482 = vpop.f32.mrf.mxu0
        %v1483 = vadd.f32 %v1214, %v1482
        %1484 = vmatmul.bf16.gmra.mxu0 %v1301
        %v1485 = vpop.f32.mrf.mxu0
        %v1486 = vadd.f32 %v1219, %v1485
        %v1487 = vpop.f32.mrf.mxu0
        %v1488 = vadd.f32 %v1224, %v1487
        %1489 = vmatmul.bf16.gmra.mxu0 %v1302
        %v1490 = vpop.f32.mrf.mxu0
        %v1491 = vadd.f32 %v1229, %v1490
        %v1492 = vpop.f32.mrf.mxu0
        %v1493 = vadd.f32 %v1234, %v1492
        %1494 = vmatmul.bf16.gmra.mxu0 %v1303
        %v1495 = vpop.f32.mrf.mxu0
        %v1496 = vadd.f32 %v1239, %v1495
        %v1497 = vpop.f32.mrf.mxu0
        %v1498 = vadd.f32 %v1244, %v1497
        %1499 = vmatmul.bf16.gmra.mxu0 %v1304
        %v1500 = vpop.f32.mrf.mxu0
        %v1501 = vadd.f32 %v1249, %v1500
        %v1502 = vpop.f32.mrf.mxu0
        %v1503 = vadd.f32 %v1254, %v1502
        %1504 = vmatmul.bf16.gmra.mxu0 %v1305
        %v1505 = vpop.f32.mrf.mxu0
        %v1506 = vadd.f32 %v1259, %v1505
        %v1507 = vpop.f32.mrf.mxu0
        %v1508 = vadd.f32 %v1264, %v1507
        %1509 = vdwg.mxu0
        %v1510 = vpack.c.bf16 %v518, %v516
        %v1511 = vpack.c.bf16 %v1326, %v1324
        %v1512 = vpack.c.bf16 %v1375, %v1373
        %v1513 = vpack.c.bf16 %v1424, %v1422
        %v1514 = vpack.c.bf16 %v1473, %v1471
        %v1515 = vpack.c.bf16 %v1331, %v1329
        %v1516 = vpack.c.bf16 %v1380, %v1378
        %v1517 = vpack.c.bf16 %v1429, %v1427
        %v1518 = vpack.c.bf16 %v1478, %v1476
        %v1519 = vpack.c.bf16 %v1336, %v1334
        %v1520 = vpack.c.bf16 %v1385, %v1383
        %v1521 = vpack.c.bf16 %v1434, %v1432
        %v1522 = vpack.c.bf16 %v1483, %v1481
        %v1523 = vpack.c.bf16 %v1341, %v1339
        %v1524 = vpack.c.bf16 %v1390, %v1388
        %v1525 = vpack.c.bf16 %v1439, %v1437
        %v1526 = vpack.c.bf16 %v1488, %v1486
        %v1527 = vpack.c.bf16 %v1346, %v1344
        %v1528 = vpack.c.bf16 %v1395, %v1393
        %v1529 = vpack.c.bf16 %v1444, %v1442
        %v1530 = vpack.c.bf16 %v1493, %v1491
        %v1531 = vpack.c.bf16 %v1351, %v1349
        %v1532 = vpack.c.bf16 %v1400, %v1398
        %v1533 = vpack.c.bf16 %v1449, %v1447
        %v1534 = vpack.c.bf16 %v1498, %v1496
        %v1535 = vpack.c.bf16 %v1356, %v1354
        %v1536 = vpack.c.bf16 %v1405, %v1403
        %v1537 = vpack.c.bf16 %v1454, %v1452
        %v1538 = vpack.c.bf16 %v1503, %v1501
        %v1539 = vpack.c.bf16 %v1361, %v1359
        %v1540 = vpack.c.bf16 %v1410, %v1408
        %v1541 = vpack.c.bf16 %v1459, %v1457
        %v1542 = vpack.c.bf16 %v1508, %v1506
        %s1543 = sld [smem:[#allocation2]]
        %v1544 = vstv %s1543
        %1545 = vmatpush.bf16.msra.mxu0 %v1539
        %1546 = vmatpush.bf16.msra.mxu0 %v1535
        %1547 = vmatpush.bf16.msra.mxu0 %v1531
        %1548 = vmatpush.bf16.msra.mxu0 %v1527
        %1549 = vmatpush.bf16.msra.mxu0 %v1523
        %1550 = vmatpush.bf16.msra.mxu0 %v1519
        %1551 = vmatpush.bf16.msra.mxu0 %v1515
        %1552 = vmatpush.bf16.msra.mxu0 %v1511
        %1553 = vmatmul.bf16.gmra.mxu0 %v1510
        %v1554 = vpop.f32.mrf.mxu0
        %v1555 = vadd.f32 %v1544, %v1554
        %v1556 = vpop.f32.mrf.mxu0
        %v1557 = vadd.f32 %v1544, %v1556
        %1558 = vdwg.mxu0
        %1559 = vmatpush.bf16.msra.mxu0 %v1540
        %1560 = vmatpush.bf16.msra.mxu0 %v1536
        %1561 = vmatpush.bf16.msra.mxu0 %v1532
        %1562 = vmatpush.bf16.msra.mxu0 %v1528
        %1563 = vmatpush.bf16.msra.mxu0 %v1524
        %1564 = vmatpush.bf16.msra.mxu0 %v1520
        %1565 = vmatpush.bf16.msra.mxu0 %v1516
        %1566 = vmatpush.bf16.msra.mxu0 %v1512
        %1567 = vmatmul.bf16.gmra.mxu0 %v1510
        %v1568 = vpop.f32.mrf.mxu0
        %v1569 = vadd.f32 %v1544, %v1568
        %v1570 = vpop.f32.mrf.mxu0
        %v1571 = vadd.f32 %v1544, %v1570
        %1572 = vdwg.mxu0
        %1573 = vmatpush.bf16.msra.mxu0 %v1541
        %1574 = vmatpush.bf16.msra.mxu0 %v1537
        %1575 = vmatpush.bf16.msra.mxu0 %v1533
        %1576 = vmatpush.bf16.msra.mxu0 %v1529
        %1577 = vmatpush.bf16.msra.mxu0 %v1525
        %1578 = vmatpush.bf16.msra.mxu0 %v1521
        %1579 = vmatpush.bf16.msra.mxu0 %v1517
        %1580 = vmatpush.bf16.msra.mxu0 %v1513
        %1581 = vmatmul.bf16.gmra.mxu0 %v1510
        %v1582 = vpop.f32.mrf.mxu0
        %v1583 = vadd.f32 %v1544, %v1582
        %v1584 = vpop.f32.mrf.mxu0
        %v1585 = vadd.f32 %v1544, %v1584
        %1586 = vdwg.mxu0
        %1587 = vmatpush.bf16.msra.mxu0 %v1542
        %1588 = vmatpush.bf16.msra.mxu0 %v1538
        %1589 = vmatpush.bf16.msra.mxu0 %v1534
        %1590 = vmatpush.bf16.msra.mxu0 %v1530
        %1591 = vmatpush.bf16.msra.mxu0 %v1526
        %1592 = vmatpush.bf16.msra.mxu0 %v1522
        %1593 = vmatpush.bf16.msra.mxu0 %v1518
        %1594 = vmatpush.bf16.msra.mxu0 %v1514
        %1595 = vmatmul.bf16.gmra.mxu0 %v1510
        %v1596 = vpop.f32.mrf.mxu0
        %v1597 = vadd.f32 %v1544, %v1596
        %v1598 = vpop.f32.mrf.mxu0
        %v1599 = vadd.f32 %v1544, %v1598
        %1600 = vdwg.mxu0
        %1601 = vst [vmem:[%s381] sm:$0xff] %v1555
        %1602 = vst [vmem:[%s381 + $0x8] sm:$0xff] %v1569
        %1603 = vst [vmem:[%s381 + $0x10] sm:$0xff] %v1583
        %1604 = vst [vmem:[%s381 + $0x18] sm:$0xff] %v1597
        %1605 = vst [vmem:[%s381 + $0x20] sm:$0xff] %v1557
        %1606 = vst [vmem:[%s381 + $0x28] sm:$0xff] %v1571
        %1607 = vst [vmem:[%s381 + $0x30] sm:$0xff] %v1585
        %1608 = vst [vmem:[%s381 + $0x38] sm:$0xff] %v1599
        %s1609 = sand.u32 %s270, 1
        %s1610 = scalar_lea.sflag [#allocation4], %s1609
        %s1611 = sand.u32 %s270, 1
        %s1612 = smul.addr %s1611, 64
        %s1613 = scalar_lea.vmem [#allocation3], %s1612
        // Predicated region
        $region65: #{tpu_custom_call.1} parent=63 // pred_check
          %p1614 = pneg %p280
        $region66: #{tpu_custom_call.1} parent=63 // pred_check_branch
          %1616 = sbr.rel (%p1614) target = $region68
        $region67: #{tpu_custom_call.1} parent=63 // pred_region
          %s1617 = smul.u32 4, %s26
          %1619 = vsyncadd %s1610, 0
          %s1620 = smul.addr %s1617, 8
          %s1621 = scalar_lea.hbm %s11, %s1620
          %s1622 = sshll.u32 %s1613, 4
          %s1623 = int_to_ptr.vmem [resolvable:$true] %s1622
          %s1624 = sshll.u32 %s1621, 4
          %s1625 = int_to_ptr.hbm [resolvable:$true] %s1624
          %1630 = dma.vmem_to_hbm [thread:$0]  %s1623, 1024, %s1625, %s1610, 512, 1024, 32
        $region68: #{tpu_custom_call.1} parent=63 // pred_fallthru
          _
      $region64: #{tpu_custom_call.1} parent=5 // pred_fallthru
        _
      %p1631 = scmp.le.s32.totalorder 2, %s21
      // Predicated region
      $region69: #{tpu_custom_call.1} parent=5 // pred_check
        %p1632 = pneg %p1631
      $region70: #{tpu_custom_call.1} parent=5 // pred_check_branch
        %1634 = sbr.rel (%p1632) target = $region72
      $region71: #{tpu_custom_call.1} parent=5 // pred_region
        %s1635 = ssub.s32 %s21, 2
        // Predicated region
        $region73: #{tpu_custom_call.1} parent=71 // pred_check
          %p1636 = pneg %p286
        $region74: #{tpu_custom_call.1} parent=71 // pred_check_branch
          %1638 = sbr.rel (%p1636) target = $region76
        $region75: #{tpu_custom_call.1} parent=71 // pred_region
          %s1639 = sand.u32 %s271, 1
          %s1640 = scalar_lea.sflag [#allocation4], %s1639
          %s1641 = sand.u32 %s271, 1
          %s1642 = smul.addr %s1641, 64
          %s1643 = scalar_lea.vmem [#allocation3], %s1642
          %1645 = dma.done %s1640, 1024
        $region76: #{tpu_custom_call.1} parent=71 // pred_fallthru
          _
      $region72: #{tpu_custom_call.1} parent=5 // pred_fallthru
        _
    $region6: #{tpu_custom_call.1} parent=1 // loop_footer
      %s25 = sadd.s32 1, %s21
    $region7: #{tpu_custom_call.1} parent=1 // loop_footer_branch
      %20 = sbr.rel target = $region3
    $region8: #{tpu_custom_call.1} parent=1 // loop_exit
      _
    %1646 = vsyncpa [#allocation4], 1
    %s1647 = scalar_lea.sflag [#allocation4], 1
    %1648 = vsyncpa %s1647, 1

</llo_original>
